<compile_context>
chip_gen: v5e
topology: v5e:2x2
jax: 0.10.0
libtpu: 0.0.40
codegen_flags: <defaults>
</compile_context>

<pallas_src>
import functools

import jax
import jax.numpy as jnp
from jax import lax
from jax.experimental import pallas as pl
from jax.experimental.pallas import tpu as pltpu

NUM_INPUTS = 14
NUM_HIDDENS = 32          # 4*H = 128 = one f32 vreg of lanes
DENSE_HIDDEN = 256
NUM_OUTPUTS = 1
SEQ_LEN = 8
BATCH_BLOCK = 16          # sequences per grid step -> T*BB = 128 MXU rows
OUT_LANES = 128           # lane-dense output width (wrapper slices lane 0)


def lstm_net_kernel(x_ref, w_ih_ref, w_hh_ref, b_ref,
                    w1_ref, b1_ref, w2_ref, b2_ref, out_ref, *, seq_len):
    """One batch-block of `BB` independent sequences, whole forward pass.

    x_ref:    (1, T*BB, num_inputs)  rows ordered time-major: row = t*BB + b
    w_ih_ref: (num_inputs, 4H)   w_hh_ref: (H, 4H)   b_ref: (1, 4H) (= b_ih+b_hh)
    w1_ref:   (H, 256)           b1_ref:   (1, 256)
    w2_ref:   (1, 256)  (dense2 weight as a row, for the VPU lane reduction)
    b2_ref:   (1, 1) scalar in SMEM
    out_ref:  (1, T*BB, 128)  lane-dense; the prediction is replicated on lanes
    """
    rows = x_ref.shape[1]                  # T*BB
    H = w_hh_ref.shape[0]
    T = seq_len
    BB = rows // T
    lanes = out_ref.shape[-1]

    w_hh = w_hh_ref[...]

    # (1) Hoisted input projection for every (timestep, sequence) row of the
    #     block, LSTM bias folded in: a single MXU pass.
    x_rows = x_ref[0]                                               # (T*BB, I)
    x_proj = (jnp.dot(x_rows, w_ih_ref[...],
                      preferred_element_type=jnp.float32)
              + b_ref[...])                                         # (T*BB, 4H)

    # (2) Recurrence, fully unrolled (T is static); h/c live in vregs.
    h = None
    c = None
    h_rows = []
    for t in range(T):
        gates = x_proj[t * BB:(t + 1) * BB, :]                      # (BB, 4H)
        if t > 0:   # h0 = 0 -> skip the first recurrent matmul entirely
            gates = gates + jnp.dot(h, w_hh,
                                    preferred_element_type=jnp.float32)
        # Whole-vreg activations (EUP); gate grouping preserved by the slices.
        sig = jax.nn.sigmoid(gates)
        tnh = jnp.tanh(gates)
        i_g = sig[:, 0 * H:1 * H]
        f_g = sig[:, 1 * H:2 * H]
        g_g = tnh[:, 2 * H:3 * H]
        o_g = sig[:, 3 * H:4 * H]
        c = i_g * g_g if t == 0 else f_g * c + i_g * g_g            # c0 = 0
        h = o_g * jnp.tanh(c)
        h_rows.append(h)

    # (3) Dense head on all T*BB rows at once (dropouts are identity at eval).
    h_all = jnp.concatenate(h_rows, axis=0)                         # (T*BB, H)
    y1 = (jnp.dot(h_all, w1_ref[...], preferred_element_type=jnp.float32)
          + b1_ref[...])                                            # (T*BB, 256)
    act = jnp.maximum(y1, 0.0)                                      # ReLU
    # 256 -> 1 projection as VPU multiply + lane reduction; b2 scalar from SMEM.
    y2 = jnp.sum(act * w2_ref[...], axis=-1, keepdims=True) + b2_ref[0, 0]
    # Lane-dense output store; wrapper keeps lane 0.
    out_ref[0] = jnp.broadcast_to(y2, (rows, lanes))


def lstm_net_forward_batched(xs, params, *, batch_block=BATCH_BLOCK):
    """xs: (B, T, num_inputs) f32 -> (B, T, num_outputs) f32 (independent seqs)."""
    B, T, I = xs.shape
    BB = batch_block
    nb = (B + BB - 1) // BB
    B_pad = nb * BB
    if B_pad != B:
        xs = jnp.concatenate(
            [xs, jnp.zeros((B_pad - B, T, I), xs.dtype)], axis=0)

    # Layout plumbing kept in XLA: each grid block sees one contiguous
    # (T*BB, I) slab of time-major rows (row = t*BB + local_seq).
    x_grid = (xs.reshape(nb, BB, T, I)
                .transpose(0, 2, 1, 3)
                .reshape(nb, T * BB, I))

    w2_row = params["w2"].reshape(1, -1)            # (1, 256) row layout

    def spec_full(shape):                           # weight resident across grid
        return pl.BlockSpec(shape, lambda i, _n=len(shape): (0,) * _n)

    out = pl.pallas_call(
        functools.partial(lstm_net_kernel, seq_len=T),
        out_shape=jax.ShapeDtypeStruct((nb, T * BB, OUT_LANES), jnp.float32),
        grid_spec=pltpu.PrefetchScalarGridSpec(
            num_scalar_prefetch=0,
            grid=(nb,),
            in_specs=[
                pl.BlockSpec((1, T * BB, I), lambda i: (i, 0, 0)),   # x block
                spec_full(params["w_ih"].shape),                     # (14, 4H)
                spec_full(params["w_hh"].shape),                     # (H, 4H)
                spec_full(params["b"].shape),                        # (1, 4H)
                spec_full(params["w1"].shape),                       # (H, 256)
                spec_full(params["b1"].shape),                       # (1, 256)
                spec_full(w2_row.shape),                             # (1, 256)
                pl.BlockSpec(memory_space=pltpu.MemorySpace.SMEM),   # b2 scalar
            ],
            out_specs=pl.BlockSpec((1, T * BB, OUT_LANES),
                                   lambda i: (i, 0, 0)),
        ),
        compiler_params=pltpu.CompilerParams(
            dimension_semantics=("parallel",)),
    )(x_grid, params["w_ih"], params["w_hh"], params["b"],
      params["w1"], params["b1"], w2_row, params["b2"])

    y = (out.reshape(nb, T, BB, OUT_LANES)
            .transpose(0, 2, 1, 3)
            .reshape(B_pad, T, OUT_LANES)[:B, :, :NUM_OUTPUTS])
    return y


def lstm_net_forward(x, params):
    """Module-equivalent forward: x (T, num_inputs) -> (T, num_outputs)."""
    return lstm_net_forward_batched(x[None], params)[0]


def lstm_net_reference(x, params):
    """Pure-JAX reference matching the PyTorch module in eval mode. x: (T, I)."""
    H = params["w_hh"].shape[0]
    hp = lax.Precision.HIGHEST
    h = jnp.zeros((1, H), jnp.float32)
    c = jnp.zeros((1, H), jnp.float32)
    hs = []
    for t in range(x.shape[0]):
        g = (jnp.dot(x[t:t + 1], params["w_ih"], precision=hp)
             + jnp.dot(h, params["w_hh"], precision=hp) + params["b"])
        i = jax.nn.sigmoid(g[:, 0:H])
        f = jax.nn.sigmoid(g[:, H:2 * H])
        gg = jnp.tanh(g[:, 2 * H:3 * H])
        o = jax.nn.sigmoid(g[:, 3 * H:4 * H])
        c = f * c + i * gg
        h = o * jnp.tanh(c)
        hs.append(h)
    h_all = jnp.concatenate(hs, axis=0)
    a = jnp.maximum(jnp.dot(h_all, params["w1"], precision=hp)
                    + params["b1"], 0.0)
    return jnp.dot(a, params["w2"], precision=hp) + params["b2"]


def init_params(key):
    """Deterministic synthetic parameters (shapes match torch.nn.LSTM / Linear)."""
    ks = jax.random.split(key, 8)
    H, I, D, O = NUM_HIDDENS, NUM_INPUTS, DENSE_HIDDEN, NUM_OUTPUTS
    scale = 0.1
    # Stored transposed vs PyTorch: (in, out). Gate order i, f, g, o along 4H.
    w_ih = scale * jax.random.normal(ks[0], (I, 4 * H), jnp.float32)
    w_hh = scale * jax.random.normal(ks[1], (H, 4 * H), jnp.float32)
    b_ih = scale * jax.random.normal(ks[2], (1, 4 * H), jnp.float32)
    b_hh = scale * jax.random.normal(ks[3], (1, 4 * H), jnp.float32)
    w1 = scale * jax.random.normal(ks[4], (H, D), jnp.float32)
    b1 = scale * jax.random.normal(ks[5], (1, D), jnp.float32)
    w2 = scale * jax.random.normal(ks[6], (D, O), jnp.float32)
    b2 = scale * jax.random.normal(ks[7], (1, O), jnp.float32)
    return {
        "w_ih": w_ih, "w_hh": w_hh, "b": b_ih + b_hh,   # PyTorch adds both biases
        "w1": w1, "b1": b1, "w2": w2, "b2": b2,
    }


if __name__ == "__main__":
    key = jax.random.PRNGKey(0)
    k_x, k_b, k_p = jax.random.split(key, 3)
    params = init_params(k_p)

    # Module-equivalent call: one sequence of length 8 (batch of 1 implicit).
    x = jax.random.normal(k_x, (SEQ_LEN, NUM_INPUTS), jnp.float32)
    y = lstm_net_forward(x, params)
    jax.block_until_ready(y)
    assert y.shape == (SEQ_LEN, NUM_OUTPUTS), y.shape
    y_ref = lstm_net_reference(x, params)
    assert jnp.allclose(y, y_ref, atol=2e-3, rtol=2e-3), \
        float(jnp.max(jnp.abs(y - y_ref)))

    # Batched throughput path: 32 independent sequences -> parallel grid of 2
    # batch-blocks (shards across both TensorCores on v7x).
    xs = jax.random.normal(k_b, (32, SEQ_LEN, NUM_INPUTS), jnp.float32)
    ys = lstm_net_forward_batched(xs, params)
    jax.block_until_ready(ys)
    assert ys.shape == (32, SEQ_LEN, NUM_OUTPUTS), ys.shape
    ys_ref = jax.vmap(lambda s: lstm_net_reference(s, params))(xs)
    assert jnp.allclose(ys, ys_ref, atol=2e-3, rtol=2e-3), \
        float(jnp.max(jnp.abs(ys - ys_ref)))

    print("KERNEL_OK")
</pallas_src>

<mosaic_0001>
module attributes {stable_mosaic.version = 11 : i64} {
  func.func @lstm_net_kernel(%arg0: i32, %arg1: memref<1x128x14xf32, #tpu.memory_space<vmem>>, %arg2: memref<14x128xf32, #tpu.memory_space<vmem>>, %arg3: memref<32x128xf32, #tpu.memory_space<vmem>>, %arg4: memref<1x128xf32, #tpu.memory_space<vmem>>, %arg5: memref<32x256xf32, #tpu.memory_space<vmem>>, %arg6: memref<1x256xf32, #tpu.memory_space<vmem>>, %arg7: memref<1x256xf32, #tpu.memory_space<vmem>>, %arg8: memref<1x1xf32, #tpu.memory_space<smem>>, %arg9: memref<1x128x128xf32, #tpu.memory_space<vmem>>) attributes {dimension_semantics = [#tpu.dimension_semantics<parallel>], iteration_bounds = array<i64: 1>, scalar_prefetch = 0 : i64, scratch_operands = 0 : i64, tpu.core_type = #tpu.core_type<tc>, window_params = [{transform_indices = @transform_0, window_bounds = array<i64: 1, 128, 14>}, {pipeline_mode = #tpu.pipeline_mode<synchronous>, transform_indices = @transform_1, window_bounds = array<i64: 14, 128>}, {pipeline_mode = #tpu.pipeline_mode<synchronous>, transform_indices = @transform_2, window_bounds = array<i64: 32, 128>}, {pipeline_mode = #tpu.pipeline_mode<synchronous>, transform_indices = @transform_3, window_bounds = array<i64: 1, 128>}, {pipeline_mode = #tpu.pipeline_mode<synchronous>, transform_indices = @transform_4, window_bounds = array<i64: 32, 256>}, {pipeline_mode = #tpu.pipeline_mode<synchronous>, transform_indices = @transform_5, window_bounds = array<i64: 1, 256>}, {pipeline_mode = #tpu.pipeline_mode<synchronous>, transform_indices = @transform_6, window_bounds = array<i64: 1, 256>}, {transform_indices = @transform_7, window_bounds = array<i64: 1, 1>}, {transform_indices = @transform_8, window_bounds = array<i64: 1, 128, 128>}]} {
    %c0 = arith.constant 0 : index
    %c0_0 = arith.constant 0 : index
    %0 = vector.load %arg3[%c0, %c0_0] : memref<32x128xf32, #tpu.memory_space<vmem>>, vector<32x128xf32>
    %c0_1 = arith.constant 0 : index
    %c0_2 = arith.constant 0 : index
    %c0_3 = arith.constant 0 : index
    %1 = vector.load %arg1[%c0_1, %c0_2, %c0_3] : memref<1x128x14xf32, #tpu.memory_space<vmem>>, vector<1x128x14xf32>
    %2 = vector.shape_cast %1 : vector<1x128x14xf32> to vector<128x14xf32>
    %c0_4 = arith.constant 0 : index
    %c0_5 = arith.constant 0 : index
    %3 = vector.load %arg2[%c0_4, %c0_5] : memref<14x128xf32, #tpu.memory_space<vmem>>, vector<14x128xf32>
    %cst = arith.constant dense<0.000000e+00> : vector<128x128xf32>
    %4 = tpu.matmul %2, %3, %cst {dimension_numbers = #tpu.dot_dimension_numbers<[1], [0], [0], [1], [0, 0, 1, 1], [], []>} : vector<128x14xf32>, vector<14x128xf32>, vector<128x128xf32> -> vector<128x128xf32>
    %c0_6 = arith.constant 0 : index
    %c0_7 = arith.constant 0 : index
    %5 = vector.load %arg4[%c0_6, %c0_7] : memref<1x128xf32, #tpu.memory_space<vmem>>, vector<1x128xf32>
    %6 = vector.broadcast %5 : vector<1x128xf32> to vector<128x128xf32>
    %7 = arith.addf %4, %6 : vector<128x128xf32>
    %8 = vector.extract_strided_slice %7 {offsets = [0, 0], sizes = [16, 128], strides = [1, 1]} : vector<128x128xf32> to vector<16x128xf32>
    %9 = arith.negf %8 : vector<16x128xf32>
    %10 = math.exp %9 : vector<16x128xf32>
    %cst_8 = arith.constant 1.000000e+00 : f32
    %11 = vector.broadcast %cst_8 : f32 to vector<16x128xf32>
    %12 = arith.addf %11, %10 : vector<16x128xf32>
    %13 = arith.divf %11, %12 : vector<16x128xf32>
    %14 = math.tanh %8 : vector<16x128xf32>
    %15 = vector.extract_strided_slice %13 {offsets = [0, 0], sizes = [16, 32], strides = [1, 1]} : vector<16x128xf32> to vector<16x32xf32>
    %16 = vector.extract_strided_slice %14 {offsets = [0, 64], sizes = [16, 32], strides = [1, 1]} : vector<16x128xf32> to vector<16x32xf32>
    %17 = vector.extract_strided_slice %13 {offsets = [0, 96], sizes = [16, 32], strides = [1, 1]} : vector<16x128xf32> to vector<16x32xf32>
    %18 = arith.mulf %15, %16 : vector<16x32xf32>
    %19 = math.tanh %18 : vector<16x32xf32>
    %20 = arith.mulf %17, %19 : vector<16x32xf32>
    %21 = vector.extract_strided_slice %7 {offsets = [16, 0], sizes = [16, 128], strides = [1, 1]} : vector<128x128xf32> to vector<16x128xf32>
    %cst_9 = arith.constant dense<0.000000e+00> : vector<16x128xf32>
    %22 = tpu.matmul %20, %0, %cst_9 {dimension_numbers = #tpu.dot_dimension_numbers<[1], [0], [0], [1], [0, 0, 1, 1], [], []>} : vector<16x32xf32>, vector<32x128xf32>, vector<16x128xf32> -> vector<16x128xf32>
    %23 = arith.addf %21, %22 : vector<16x128xf32>
    %24 = arith.negf %23 : vector<16x128xf32>
    %25 = math.exp %24 : vector<16x128xf32>
    %cst_10 = arith.constant 1.000000e+00 : f32
    %26 = vector.broadcast %cst_10 : f32 to vector<16x128xf32>
    %27 = arith.addf %26, %25 : vector<16x128xf32>
    %28 = arith.divf %26, %27 : vector<16x128xf32>
    %29 = math.tanh %23 : vector<16x128xf32>
    %30 = vector.extract_strided_slice %28 {offsets = [0, 0], sizes = [16, 32], strides = [1, 1]} : vector<16x128xf32> to vector<16x32xf32>
    %31 = vector.extract_strided_slice %28 {offsets = [0, 32], sizes = [16, 32], strides = [1, 1]} : vector<16x128xf32> to vector<16x32xf32>
    %32 = vector.extract_strided_slice %29 {offsets = [0, 64], sizes = [16, 32], strides = [1, 1]} : vector<16x128xf32> to vector<16x32xf32>
    %33 = vector.extract_strided_slice %28 {offsets = [0, 96], sizes = [16, 32], strides = [1, 1]} : vector<16x128xf32> to vector<16x32xf32>
    %34 = arith.mulf %31, %18 : vector<16x32xf32>
    %35 = arith.mulf %30, %32 : vector<16x32xf32>
    %36 = arith.addf %34, %35 : vector<16x32xf32>
    %37 = math.tanh %36 : vector<16x32xf32>
    %38 = arith.mulf %33, %37 : vector<16x32xf32>
    %39 = vector.extract_strided_slice %7 {offsets = [32, 0], sizes = [16, 128], strides = [1, 1]} : vector<128x128xf32> to vector<16x128xf32>
    %cst_11 = arith.constant dense<0.000000e+00> : vector<16x128xf32>
    %40 = tpu.matmul %38, %0, %cst_11 {dimension_numbers = #tpu.dot_dimension_numbers<[1], [0], [0], [1], [0, 0, 1, 1], [], []>} : vector<16x32xf32>, vector<32x128xf32>, vector<16x128xf32> -> vector<16x128xf32>
    %41 = arith.addf %39, %40 : vector<16x128xf32>
    %42 = arith.negf %41 : vector<16x128xf32>
    %43 = math.exp %42 : vector<16x128xf32>
    %cst_12 = arith.constant 1.000000e+00 : f32
    %44 = vector.broadcast %cst_12 : f32 to vector<16x128xf32>
    %45 = arith.addf %44, %43 : vector<16x128xf32>
    %46 = arith.divf %44, %45 : vector<16x128xf32>
    %47 = math.tanh %41 : vector<16x128xf32>
    %48 = vector.extract_strided_slice %46 {offsets = [0, 0], sizes = [16, 32], strides = [1, 1]} : vector<16x128xf32> to vector<16x32xf32>
    %49 = vector.extract_strided_slice %46 {offsets = [0, 32], sizes = [16, 32], strides = [1, 1]} : vector<16x128xf32> to vector<16x32xf32>
    %50 = vector.extract_strided_slice %47 {offsets = [0, 64], sizes = [16, 32], strides = [1, 1]} : vector<16x128xf32> to vector<16x32xf32>
    %51 = vector.extract_strided_slice %46 {offsets = [0, 96], sizes = [16, 32], strides = [1, 1]} : vector<16x128xf32> to vector<16x32xf32>
    %52 = arith.mulf %49, %36 : vector<16x32xf32>
    %53 = arith.mulf %48, %50 : vector<16x32xf32>
    %54 = arith.addf %52, %53 : vector<16x32xf32>
    %55 = math.tanh %54 : vector<16x32xf32>
    %56 = arith.mulf %51, %55 : vector<16x32xf32>
    %57 = vector.extract_strided_slice %7 {offsets = [48, 0], sizes = [16, 128], strides = [1, 1]} : vector<128x128xf32> to vector<16x128xf32>
    %cst_13 = arith.constant dense<0.000000e+00> : vector<16x128xf32>
    %58 = tpu.matmul %56, %0, %cst_13 {dimension_numbers = #tpu.dot_dimension_numbers<[1], [0], [0], [1], [0, 0, 1, 1], [], []>} : vector<16x32xf32>, vector<32x128xf32>, vector<16x128xf32> -> vector<16x128xf32>
    %59 = arith.addf %57, %58 : vector<16x128xf32>
    %60 = arith.negf %59 : vector<16x128xf32>
    %61 = math.exp %60 : vector<16x128xf32>
    %cst_14 = arith.constant 1.000000e+00 : f32
    %62 = vector.broadcast %cst_14 : f32 to vector<16x128xf32>
    %63 = arith.addf %62, %61 : vector<16x128xf32>
    %64 = arith.divf %62, %63 : vector<16x128xf32>
    %65 = math.tanh %59 : vector<16x128xf32>
    %66 = vector.extract_strided_slice %64 {offsets = [0, 0], sizes = [16, 32], strides = [1, 1]} : vector<16x128xf32> to vector<16x32xf32>
    %67 = vector.extract_strided_slice %64 {offsets = [0, 32], sizes = [16, 32], strides = [1, 1]} : vector<16x128xf32> to vector<16x32xf32>
    %68 = vector.extract_strided_slice %65 {offsets = [0, 64], sizes = [16, 32], strides = [1, 1]} : vector<16x128xf32> to vector<16x32xf32>
    %69 = vector.extract_strided_slice %64 {offsets = [0, 96], sizes = [16, 32], strides = [1, 1]} : vector<16x128xf32> to vector<16x32xf32>
    %70 = arith.mulf %67, %54 : vector<16x32xf32>
    %71 = arith.mulf %66, %68 : vector<16x32xf32>
    %72 = arith.addf %70, %71 : vector<16x32xf32>
    %73 = math.tanh %72 : vector<16x32xf32>
    %74 = arith.mulf %69, %73 : vector<16x32xf32>
    %75 = vector.extract_strided_slice %7 {offsets = [64, 0], sizes = [16, 128], strides = [1, 1]} : vector<128x128xf32> to vector<16x128xf32>
    %cst_15 = arith.constant dense<0.000000e+00> : vector<16x128xf32>
    %76 = tpu.matmul %74, %0, %cst_15 {dimension_numbers = #tpu.dot_dimension_numbers<[1], [0], [0], [1], [0, 0, 1, 1], [], []>} : vector<16x32xf32>, vector<32x128xf32>, vector<16x128xf32> -> vector<16x128xf32>
    %77 = arith.addf %75, %76 : vector<16x128xf32>
    %78 = arith.negf %77 : vector<16x128xf32>
    %79 = math.exp %78 : vector<16x128xf32>
    %cst_16 = arith.constant 1.000000e+00 : f32
    %80 = vector.broadcast %cst_16 : f32 to vector<16x128xf32>
    %81 = arith.addf %80, %79 : vector<16x128xf32>
    %82 = arith.divf %80, %81 : vector<16x128xf32>
    %83 = math.tanh %77 : vector<16x128xf32>
    %84 = vector.extract_strided_slice %82 {offsets = [0, 0], sizes = [16, 32], strides = [1, 1]} : vector<16x128xf32> to vector<16x32xf32>
    %85 = vector.extract_strided_slice %82 {offsets = [0, 32], sizes = [16, 32], strides = [1, 1]} : vector<16x128xf32> to vector<16x32xf32>
    %86 = vector.extract_strided_slice %83 {offsets = [0, 64], sizes = [16, 32], strides = [1, 1]} : vector<16x128xf32> to vector<16x32xf32>
    %87 = vector.extract_strided_slice %82 {offsets = [0, 96], sizes = [16, 32], strides = [1, 1]} : vector<16x128xf32> to vector<16x32xf32>
    %88 = arith.mulf %85, %72 : vector<16x32xf32>
    %89 = arith.mulf %84, %86 : vector<16x32xf32>
    %90 = arith.addf %88, %89 : vector<16x32xf32>
    %91 = math.tanh %90 : vector<16x32xf32>
    %92 = arith.mulf %87, %91 : vector<16x32xf32>
    %93 = vector.extract_strided_slice %7 {offsets = [80, 0], sizes = [16, 128], strides = [1, 1]} : vector<128x128xf32> to vector<16x128xf32>
    %cst_17 = arith.constant dense<0.000000e+00> : vector<16x128xf32>
    %94 = tpu.matmul %92, %0, %cst_17 {dimension_numbers = #tpu.dot_dimension_numbers<[1], [0], [0], [1], [0, 0, 1, 1], [], []>} : vector<16x32xf32>, vector<32x128xf32>, vector<16x128xf32> -> vector<16x128xf32>
    %95 = arith.addf %93, %94 : vector<16x128xf32>
    %96 = arith.negf %95 : vector<16x128xf32>
    %97 = math.exp %96 : vector<16x128xf32>
    %cst_18 = arith.constant 1.000000e+00 : f32
    %98 = vector.broadcast %cst_18 : f32 to vector<16x128xf32>
    %99 = arith.addf %98, %97 : vector<16x128xf32>
    %100 = arith.divf %98, %99 : vector<16x128xf32>
    %101 = math.tanh %95 : vector<16x128xf32>
    %102 = vector.extract_strided_slice %100 {offsets = [0, 0], sizes = [16, 32], strides = [1, 1]} : vector<16x128xf32> to vector<16x32xf32>
    %103 = vector.extract_strided_slice %100 {offsets = [0, 32], sizes = [16, 32], strides = [1, 1]} : vector<16x128xf32> to vector<16x32xf32>
    %104 = vector.extract_strided_slice %101 {offsets = [0, 64], sizes = [16, 32], strides = [1, 1]} : vector<16x128xf32> to vector<16x32xf32>
    %105 = vector.extract_strided_slice %100 {offsets = [0, 96], sizes = [16, 32], strides = [1, 1]} : vector<16x128xf32> to vector<16x32xf32>
    %106 = arith.mulf %103, %90 : vector<16x32xf32>
    %107 = arith.mulf %102, %104 : vector<16x32xf32>
    %108 = arith.addf %106, %107 : vector<16x32xf32>
    %109 = math.tanh %108 : vector<16x32xf32>
    %110 = arith.mulf %105, %109 : vector<16x32xf32>
    %111 = vector.extract_strided_slice %7 {offsets = [96, 0], sizes = [16, 128], strides = [1, 1]} : vector<128x128xf32> to vector<16x128xf32>
    %cst_19 = arith.constant dense<0.000000e+00> : vector<16x128xf32>
    %112 = tpu.matmul %110, %0, %cst_19 {dimension_numbers = #tpu.dot_dimension_numbers<[1], [0], [0], [1], [0, 0, 1, 1], [], []>} : vector<16x32xf32>, vector<32x128xf32>, vector<16x128xf32> -> vector<16x128xf32>
    %113 = arith.addf %111, %112 : vector<16x128xf32>
    %114 = arith.negf %113 : vector<16x128xf32>
    %115 = math.exp %114 : vector<16x128xf32>
    %cst_20 = arith.constant 1.000000e+00 : f32
    %116 = vector.broadcast %cst_20 : f32 to vector<16x128xf32>
    %117 = arith.addf %116, %115 : vector<16x128xf32>
    %118 = arith.divf %116, %117 : vector<16x128xf32>
    %119 = math.tanh %113 : vector<16x128xf32>
    %120 = vector.extract_strided_slice %118 {offsets = [0, 0], sizes = [16, 32], strides = [1, 1]} : vector<16x128xf32> to vector<16x32xf32>
    %121 = vector.extract_strided_slice %118 {offsets = [0, 32], sizes = [16, 32], strides = [1, 1]} : vector<16x128xf32> to vector<16x32xf32>
    %122 = vector.extract_strided_slice %119 {offsets = [0, 64], sizes = [16, 32], strides = [1, 1]} : vector<16x128xf32> to vector<16x32xf32>
    %123 = vector.extract_strided_slice %118 {offsets = [0, 96], sizes = [16, 32], strides = [1, 1]} : vector<16x128xf32> to vector<16x32xf32>
    %124 = arith.mulf %121, %108 : vector<16x32xf32>
    %125 = arith.mulf %120, %122 : vector<16x32xf32>
    %126 = arith.addf %124, %125 : vector<16x32xf32>
    %127 = math.tanh %126 : vector<16x32xf32>
    %128 = arith.mulf %123, %127 : vector<16x32xf32>
    %129 = vector.extract_strided_slice %7 {offsets = [112, 0], sizes = [16, 128], strides = [1, 1]} : vector<128x128xf32> to vector<16x128xf32>
    %cst_21 = arith.constant dense<0.000000e+00> : vector<16x128xf32>
    %130 = tpu.matmul %128, %0, %cst_21 {dimension_numbers = #tpu.dot_dimension_numbers<[1], [0], [0], [1], [0, 0, 1, 1], [], []>} : vector<16x32xf32>, vector<32x128xf32>, vector<16x128xf32> -> vector<16x128xf32>
    %131 = arith.addf %129, %130 : vector<16x128xf32>
    %132 = arith.negf %131 : vector<16x128xf32>
    %133 = math.exp %132 : vector<16x128xf32>
    %cst_22 = arith.constant 1.000000e+00 : f32
    %134 = vector.broadcast %cst_22 : f32 to vector<16x128xf32>
    %135 = arith.addf %134, %133 : vector<16x128xf32>
    %136 = arith.divf %134, %135 : vector<16x128xf32>
    %137 = math.tanh %131 : vector<16x128xf32>
    %138 = vector.extract_strided_slice %136 {offsets = [0, 0], sizes = [16, 32], strides = [1, 1]} : vector<16x128xf32> to vector<16x32xf32>
    %139 = vector.extract_strided_slice %136 {offsets = [0, 32], sizes = [16, 32], strides = [1, 1]} : vector<16x128xf32> to vector<16x32xf32>
    %140 = vector.extract_strided_slice %137 {offsets = [0, 64], sizes = [16, 32], strides = [1, 1]} : vector<16x128xf32> to vector<16x32xf32>
    %141 = vector.extract_strided_slice %136 {offsets = [0, 96], sizes = [16, 32], strides = [1, 1]} : vector<16x128xf32> to vector<16x32xf32>
    %142 = arith.mulf %139, %126 : vector<16x32xf32>
    %143 = arith.mulf %138, %140 : vector<16x32xf32>
    %144 = arith.addf %142, %143 : vector<16x32xf32>
    %145 = math.tanh %144 : vector<16x32xf32>
    %146 = arith.mulf %141, %145 : vector<16x32xf32>
    %147 = tpu.concatenate %20, %38, %56, %74, %92, %110, %128, %146 in 0 : vector<16x32xf32>, vector<16x32xf32>, vector<16x32xf32>, vector<16x32xf32>, vector<16x32xf32>, vector<16x32xf32>, vector<16x32xf32>, vector<16x32xf32> -> vector<128x32xf32>
    %c0_23 = arith.constant 0 : index
    %c0_24 = arith.constant 0 : index
    %148 = vector.load %arg5[%c0_23, %c0_24] : memref<32x256xf32, #tpu.memory_space<vmem>>, vector<32x256xf32>
    %cst_25 = arith.constant dense<0.000000e+00> : vector<128x256xf32>
    %149 = tpu.matmul %147, %148, %cst_25 {dimension_numbers = #tpu.dot_dimension_numbers<[1], [0], [0], [1], [0, 0, 1, 1], [], []>} : vector<128x32xf32>, vector<32x256xf32>, vector<128x256xf32> -> vector<128x256xf32>
    %c0_26 = arith.constant 0 : index
    %c0_27 = arith.constant 0 : index
    %150 = vector.load %arg6[%c0_26, %c0_27] : memref<1x256xf32, #tpu.memory_space<vmem>>, vector<1x256xf32>
    %151 = vector.broadcast %150 : vector<1x256xf32> to vector<128x256xf32>
    %152 = arith.addf %149, %151 : vector<128x256xf32>
    %cst_28 = arith.constant 0.000000e+00 : f32
    %153 = vector.broadcast %cst_28 : f32 to vector<128x256xf32>
    %154 = arith.maximumf %152, %153 : vector<128x256xf32>
    %c0_29 = arith.constant 0 : index
    %c0_30 = arith.constant 0 : index
    %155 = vector.load %arg7[%c0_29, %c0_30] : memref<1x256xf32, #tpu.memory_space<vmem>>, vector<1x256xf32>
    %156 = vector.broadcast %155 : vector<1x256xf32> to vector<128x256xf32>
    %157 = arith.mulf %154, %156 : vector<128x256xf32>
    %cst_31 = arith.constant dense<0.000000e+00> : vector<128xf32>
    %158 = vector.multi_reduction <add>, %157, %cst_31 [1] : vector<128x256xf32> to vector<128xf32>
    %159 = vector.shape_cast %158 : vector<128xf32> to vector<128x1xf32>
    %c0_32 = arith.constant 0 : index
    %c0_33 = arith.constant 0 : index
    %160 = memref.load %arg8[%c0_32, %c0_33] : memref<1x1xf32, #tpu.memory_space<smem>>
    %161 = vector.broadcast %160 : f32 to vector<128x1xf32>
    %162 = arith.addf %159, %161 : vector<128x1xf32>
    %163 = vector.shape_cast %162 : vector<128x1xf32> to vector<128x1xf32>
    %164 = vector.broadcast %163 : vector<128x1xf32> to vector<128x128xf32>
    %c0_34 = arith.constant 0 : index
    %c0_35 = arith.constant 0 : index
    %c0_36 = arith.constant 0 : index
    %165 = vector.load %arg9[%c0_34, %c0_35, %c0_36] : memref<1x128x128xf32, #tpu.memory_space<vmem>>, vector<1x128x128xf32>
    %166 = vector.shape_cast %165 : vector<1x128x128xf32> to vector<128x128xf32>
    %167 = vector.shape_cast %164 : vector<128x128xf32> to vector<1x128x128xf32>
    tpu.vector_store %arg9[%c0_34, %c0_35, %c0_36], %167 {strides = array<i32>} : memref<1x128x128xf32, #tpu.memory_space<vmem>>, vector<1x128x128xf32>,
    return
  }
  func.func @transform_0(%arg0: i32) -> (i32, i32, i32) {
    %c0_i32 = arith.constant 0 : i32
    %c0_i32_0 = arith.constant 0 : i32
    %c0_i32_1 = arith.constant 0 : i32
    return %arg0, %c0_i32, %c0_i32_0 : i32, i32, i32
  }
  func.func @transform_1(%arg0: i32) -> (i32, i32) {
    %c0_i32 = arith.constant 0 : i32
    %c0_i32_0 = arith.constant 0 : i32
    %c0_i32_1 = arith.constant 0 : i32
    return %c0_i32, %c0_i32_0 : i32, i32
  }
  func.func @transform_2(%arg0: i32) -> (i32, i32) {
    %c0_i32 = arith.constant 0 : i32
    %c0_i32_0 = arith.constant 0 : i32
    %c0_i32_1 = arith.constant 0 : i32
    return %c0_i32, %c0_i32_0 : i32, i32
  }
  func.func @transform_3(%arg0: i32) -> (i32, i32) {
    %c0_i32 = arith.constant 0 : i32
    %c0_i32_0 = arith.constant 0 : i32
    %c0_i32_1 = arith.constant 0 : i32
    return %c0_i32, %c0_i32_0 : i32, i32
  }
  func.func @transform_4(%arg0: i32) -> (i32, i32) {
    %c0_i32 = arith.constant 0 : i32
    %c0_i32_0 = arith.constant 0 : i32
    %c0_i32_1 = arith.constant 0 : i32
    return %c0_i32, %c0_i32_0 : i32, i32
  }
  func.func @transform_5(%arg0: i32) -> (i32, i32) {
    %c0_i32 = arith.constant 0 : i32
    %c0_i32_0 = arith.constant 0 : i32
    %c0_i32_1 = arith.constant 0 : i32
    return %c0_i32, %c0_i32_0 : i32, i32
  }
  func.func @transform_6(%arg0: i32) -> (i32, i32) {
    %c0_i32 = arith.constant 0 : i32
    %c0_i32_0 = arith.constant 0 : i32
    %c0_i32_1 = arith.constant 0 : i32
    return %c0_i32, %c0_i32_0 : i32, i32
  }
  func.func @transform_7(%arg0: i32) -> (i32, i32) {
    %c0_i32 = arith.constant 0 : i32
    %c0_i32_0 = arith.constant 0 : i32
    %c0_i32_1 = arith.constant 0 : i32
    return %c0_i32, %c0_i32_0 : i32, i32
  }
  func.func @transform_8(%arg0: i32) -> (i32, i32, i32) {
    %c0_i32 = arith.constant 0 : i32
    %c0_i32_0 = arith.constant 0 : i32
    %c0_i32_1 = arith.constant 0 : i32
    return %arg0, %c0_i32, %c0_i32_0 : i32, i32, i32
  }
}

</mosaic_0001>

<llo_original>
// kernel: tpu_custom_call.1
$region0: #{tpu_custom_call.1}
  #allocation0 [shape = 'u32[]', space=smem, size = 0x4, offset = 0x4, fixed_abs, tag = 'smem constant byte address 0x4 - core index']
  #allocation1 [shape = 'u32[72,128]{1,0:T(1,128)}', space=vmem, size = 0x9000, scoped, tag = 'internal scratch']
  #allocation2 [shape = 'f32[1,1]{1,0:T(1,128)S(6)}', space=smem, size = 0x200, scoped, tag = 'scoped memory for tpu_custom_call.1']
  %s0 = inlined_call_operand.vmem [shape: f32[1,128,14], index: 0, kind: input, shape index: {}]
  %s1 = inlined_call_operand.vmem [shape: f32[14,128], index: 1, kind: input, shape index: {}]
  %s2 = inlined_call_operand.vmem [shape: f32[32,128], index: 2, kind: input, shape index: {}]
  %s3 = inlined_call_operand.vmem [shape: f32[1,128], index: 3, kind: input, shape index: {}]
  %s4 = inlined_call_operand.vmem [shape: f32[32,256], index: 4, kind: input, shape index: {}]
  %s5 = inlined_call_operand.vmem [shape: f32[1,256], index: 5, kind: input, shape index: {}]
  %s6 = inlined_call_operand.vmem [shape: f32[1,256], index: 6, kind: input, shape index: {}]
  %s7 = inlined_call_operand.<no memory space> [shape: f32[1,1], index: 7, kind: input, shape index: {}]
  %s8 = inlined_call_operand.hbm [shape: f32[1,128,128], index: 8, kind: output, shape index: {}]
  %s9 = sld [smem:[#allocation0]]
  $region42: #{tpu_custom_call.1} parent=0
    _
  %s11 = ssub.s32 1, %s9
  %s12 = scalar_select 0, %s11, %s9
  %13 = sst [smem:[#allocation2]] %s7
  $region1: #{tpu_custom_call.1} parent=0
    #allocation3 [shape = 'u8[65536]{0}', space=vmem, size = 0x10000, scoped, tag = 'output window, operand 0, single buffered']
    #allocation4 [shape = 's32[1]{0}', space=sflag, size = 0x4, scoped, tag = 'scoped memory for tpu_custom_call.1']
    %14 = vsyncpa [#allocation4], 0
    // Predicated region
    $region2: #{tpu_custom_call.1} parent=1 // pred_check
      _
    $region3: #{tpu_custom_call.1} parent=1 // pred_check_branch
      %16 = sbr.rel (0) target = $region5
    $region4: #{tpu_custom_call.1} parent=1 // pred_region
      _
    $region5: #{tpu_custom_call.1} parent=1 // pred_fallthru
      _
    // Predicated region
    $region6: #{tpu_custom_call.1} parent=1 // pred_check
      _
    $region7: #{tpu_custom_call.1} parent=1 // pred_check_branch
      %18 = sbr.rel (0) target = $region9
    $region8: #{tpu_custom_call.1} parent=1 // pred_region
      _
    $region9: #{tpu_custom_call.1} parent=1 // pred_fallthru
      _
    // Predicated region
    $region10: #{tpu_custom_call.1} parent=1 // pred_check
      _
    $region11: #{tpu_custom_call.1} parent=1 // pred_check_branch
      %20 = sbr.rel (0) target = $region13
    $region12: #{tpu_custom_call.1} parent=1 // pred_region
      _
    $region13: #{tpu_custom_call.1} parent=1 // pred_fallthru
      _
    // Predicated region
    $region14: #{tpu_custom_call.1} parent=1 // pred_check
      _
    $region15: #{tpu_custom_call.1} parent=1 // pred_check_branch
      %22 = sbr.rel (0) target = $region17
    $region16: #{tpu_custom_call.1} parent=1 // pred_region
      _
    $region17: #{tpu_custom_call.1} parent=1 // pred_fallthru
      _
    // Predicated region
    $region18: #{tpu_custom_call.1} parent=1 // pred_check
      _
    $region19: #{tpu_custom_call.1} parent=1 // pred_check_branch
      %24 = sbr.rel (0) target = $region21
    $region20: #{tpu_custom_call.1} parent=1 // pred_region
      _
    $region21: #{tpu_custom_call.1} parent=1 // pred_fallthru
      _
    // Predicated region
    $region22: #{tpu_custom_call.1} parent=1 // pred_check
      _
    $region23: #{tpu_custom_call.1} parent=1 // pred_check_branch
      %26 = sbr.rel (0) target = $region25
    $region24: #{tpu_custom_call.1} parent=1 // pred_region
      _
    $region25: #{tpu_custom_call.1} parent=1 // pred_fallthru
      _
    // Predicated region
    $region26: #{tpu_custom_call.1} parent=1 // pred_check
      _
    $region27: #{tpu_custom_call.1} parent=1 // pred_check_branch
      %28 = sbr.rel (0) target = $region29
    $region28: #{tpu_custom_call.1} parent=1 // pred_region
      _
    $region29: #{tpu_custom_call.1} parent=1 // pred_fallthru
      _
    // Predicated region
    $region30: #{tpu_custom_call.1} parent=1 // pred_check
      _
    $region31: #{tpu_custom_call.1} parent=1 // pred_check_branch
      %30 = sbr.rel (0) target = $region33
    $region32: #{tpu_custom_call.1} parent=1 // pred_region
      _
    $region33: #{tpu_custom_call.1} parent=1 // pred_fallthru
      _
    %v31 = vld [vmem:[%s2] sm:$0xff]
    %v32 = vld [vmem:[%s2 + $0x8] sm:$0xff]
    %v33 = vld [vmem:[%s2 + $0x10] sm:$0xff]
    %v34 = vld [vmem:[%s2 + $0x18] sm:$0xff]
    %v35 = vld [vmem:[%s0] sm:$0xff]
    %v36 = vld [vmem:[%s0 + $0x8] sm:$0xff]
    %v37 = vld [vmem:[%s0 + $0x10] sm:$0xff]
    %v38 = vld [vmem:[%s0 + $0x18] sm:$0xff]
    %v39 = vld [vmem:[%s0 + $0x20] sm:$0xff]
    %v40 = vld [vmem:[%s0 + $0x28] sm:$0xff]
    %v41 = vld [vmem:[%s0 + $0x30] sm:$0xff]
    %v42 = vld [vmem:[%s0 + $0x38] sm:$0xff]
    %v43 = vld [vmem:[%s0 + $0x40] sm:$0xff]
    %v44 = vld [vmem:[%s0 + $0x48] sm:$0xff]
    %v45 = vld [vmem:[%s0 + $0x50] sm:$0xff]
    %v46 = vld [vmem:[%s0 + $0x58] sm:$0xff]
    %v47 = vld [vmem:[%s0 + $0x60] sm:$0xff]
    %v48 = vld [vmem:[%s0 + $0x68] sm:$0xff]
    %v49 = vld [vmem:[%s0 + $0x70] sm:$0xff]
    %v50 = vld [vmem:[%s0 + $0x78] sm:$0xff]
    %v51 = vld [vmem:[%s1] sm:$0xff]
    %v52 = vld [vmem:[%s1 + $0x8] sm:$0x3f]
    %v53 = vld [vmem:[%s3] sm:$0x1]
    %v55 = vperm.slane %v53, 0
    %vm57 = vcmask 113664
    %v59 = vsel %vm57, %v35, 0
    %v62 = vsel %vm57, %v36, 0
    %v65 = vsel %vm57, %v37, 0
    %v68 = vsel %vm57, %v38, 0
    %v71 = vsel %vm57, %v39, 0
    %v74 = vsel %vm57, %v40, 0
    %v77 = vsel %vm57, %v41, 0
    %v80 = vsel %vm57, %v42, 0
    %v83 = vsel %vm57, %v43, 0
    %v86 = vsel %vm57, %v44, 0
    %v89 = vsel %vm57, %v45, 0
    %v92 = vsel %vm57, %v46, 0
    %v95 = vsel %vm57, %v47, 0
    %v98 = vsel %vm57, %v48, 0
    %v101 = vsel %vm57, %v49, 0
    %v104 = vsel %vm57, %v50, 0
    %vm106 = vcmask 1045504
    %v108 = vsel %vm106, %v52, 0
    %110 = vmatpush.msra.mxu0 0.0
    %111 = vmatpush.msra.mxu0 0.0
    %112 = vmatpush.msra.mxu0 0.0
    %113 = vmatpush.msra.mxu0 0.0
    %114 = vmatpush.msra.mxu0 0.0
    %115 = vmatpush.msra.mxu0 0.0
    %116 = vmatpush.msra.mxu0 0.0
    %117 = vmatpush.msra.mxu0 0.0
    %118 = vmatpush.msra.mxu0 0.0
    %119 = vmatpush.msra.mxu0 0.0
    %120 = vmatpush.msra.mxu0 0.0
    %121 = vmatpush.msra.mxu0 0.0
    %122 = vmatpush.msra.mxu0 0.0
    %123 = vmatpush.msra.mxu0 0.0
    %124 = vmatpush.msra.mxu0 %v108
    %125 = vmatpush.msra.mxu0 %v51
    %126 = vmatmul.f32.gmra.mxu0 %v59
    %v127 = vpop.f32.mrf.mxu0
    %v128 = vadd.f32 %v55, %v127
    %129 = vmatmul.f32.gmra.mxu0 %v62
    %v130 = vpop.f32.mrf.mxu0
    %v131 = vadd.f32 %v55, %v130
    %132 = vmatmul.f32.gmra.mxu0 %v65
    %v133 = vpop.f32.mrf.mxu0
    %v134 = vadd.f32 %v55, %v133
    %135 = vmatmul.f32.gmra.mxu0 %v68
    %v136 = vpop.f32.mrf.mxu0
    %v137 = vadd.f32 %v55, %v136
    %138 = vmatmul.f32.gmra.mxu0 %v71
    %v139 = vpop.f32.mrf.mxu0
    %v140 = vadd.f32 %v55, %v139
    %141 = vmatmul.f32.gmra.mxu0 %v74
    %v142 = vpop.f32.mrf.mxu0
    %v143 = vadd.f32 %v55, %v142
    %144 = vmatmul.f32.gmra.mxu0 %v77
    %v145 = vpop.f32.mrf.mxu0
    %v146 = vadd.f32 %v55, %v145
    %147 = vmatmul.f32.gmra.mxu0 %v80
    %v148 = vpop.f32.mrf.mxu0
    %v149 = vadd.f32 %v55, %v148
    %150 = vmatmul.f32.gmra.mxu0 %v83
    %v151 = vpop.f32.mrf.mxu0
    %v152 = vadd.f32 %v55, %v151
    %153 = vmatmul.f32.gmra.mxu0 %v86
    %v154 = vpop.f32.mrf.mxu0
    %v155 = vadd.f32 %v55, %v154
    %156 = vmatmul.f32.gmra.mxu0 %v89
    %v157 = vpop.f32.mrf.mxu0
    %v158 = vadd.f32 %v55, %v157
    %159 = vmatmul.f32.gmra.mxu0 %v92
    %v160 = vpop.f32.mrf.mxu0
    %v161 = vadd.f32 %v55, %v160
    %162 = vmatmul.f32.gmra.mxu0 %v95
    %v163 = vpop.f32.mrf.mxu0
    %v164 = vadd.f32 %v55, %v163
    %165 = vmatmul.f32.gmra.mxu0 %v98
    %v166 = vpop.f32.mrf.mxu0
    %v167 = vadd.f32 %v55, %v166
    %168 = vmatmul.f32.gmra.mxu0 %v101
    %v169 = vpop.f32.mrf.mxu0
    %v170 = vadd.f32 %v55, %v169
    %171 = vmatmul.f32.gmra.mxu0 %v104
    %v172 = vpop.f32.mrf.mxu0
    %v173 = vadd.f32 %v55, %v172
    %174 = vdwg.mxu0
    %v175 = vxor.u32 %v128, 2147483648
    %v176 = vxor.u32 %v131, 2147483648
    %v177 = vmul.f32 %v175, 1.442695
    %v178 = vpow.pop %v177
    %v179 = vmul.f32 %v176, 1.442695
    %v180 = vpow.pop %v179
    %v181 = vadd.f32 %v178, 1.0
    %v182 = vadd.f32 %v180, 1.0
    %v183 = vrcp.pop %v181
    %v184 = vmul.f32 %v181, %v183
    %v185 = vsub.f32 1.0, %v184
    %v186 = vmul.f32 %v183, %v185
    %v187 = vadd.f32 %v183, %v186
    %vm188 = vweird.f32 %v181
    %vm189 = vweird.f32 %v183
    %vm190 = vmor %vm188, %vm189
    %v191 = vsel %vm190, %v183, %v187
    %v192 = vand.u32 2147483647, %v181
    %vm193 = vcmp.eq.f32.partialorder %v192, 8.507059e+37
    %v194 = vand.u32 %v181, 2147483648
    %v195 = vor.u32 1.1754944e-38, %v194
    %v196 = vsel %vm193, %v195, %v191
    %v197 = vmul.f32 1.0, %v196
    %v198 = vrcp.pop %v182
    %v199 = vmul.f32 %v182, %v198
    %v200 = vsub.f32 1.0, %v199
    %v201 = vmul.f32 %v198, %v200
    %v202 = vadd.f32 %v198, %v201
    %vm203 = vweird.f32 %v182
    %vm204 = vweird.f32 %v198
    %vm205 = vmor %vm203, %vm204
    %v206 = vsel %vm205, %v198, %v202
    %v207 = vand.u32 2147483647, %v182
    %vm208 = vcmp.eq.f32.partialorder %v207, 8.507059e+37
    %v209 = vand.u32 %v182, 2147483648
    %v210 = vor.u32 1.1754944e-38, %v209
    %v211 = vsel %vm208, %v210, %v206
    %v212 = vmul.f32 1.0, %v211
    %v213 = vtanh.pop %v128
    %v214 = vtanh.pop %v131
    %217 = vrot.lane.b32.xlu0 %v213, 64
    %v218 = vpop.permute.xlu0 %217
    %219 = vrot.lane.b32.xlu0 %v214, 64
    %v220 = vpop.permute.xlu0 %219
    %v223 = vmul.f32 %v197, %v218
    %v224 = vmul.f32 %v212, %v220
    %v225 = vtanh.pop %v223
    %v226 = vtanh.pop %v224
    %229 = vrot.lane.b32.xlu0 %v225, 96
    %v230 = vpop.permute.xlu0 %229
    %231 = vrot.lane.b32.xlu0 %v226, 96
    %v232 = vpop.permute.xlu0 %231
    %v235 = vmul.f32 %v197, %v230
    %v236 = vmul.f32 %v212, %v232
    %239 = vrot.lane.b32.xlu0 %v235, 32
    %v240 = vpop.permute.xlu0 %239
    %241 = vrot.lane.b32.xlu0 %v236, 32
    %v242 = vpop.permute.xlu0 %241
    %vm243 = vcmask 261120
    %v244 = vsel %vm243, %v240, 0
    %v246 = vsel %vm243, %v242, 0
    %248 = vmatpush.msra.mxu0 0.0
    %249 = vmatpush.msra.mxu0 0.0
    %250 = vmatpush.msra.mxu0 0.0
    %251 = vmatpush.msra.mxu0 0.0
    %252 = vmatpush.msra.mxu0 0.0
    %253 = vmatpush.msra.mxu0 0.0
    %254 = vmatpush.msra.mxu0 0.0
    %255 = vmatpush.msra.mxu0 0.0
    %256 = vmatpush.msra.mxu0 0.0
    %257 = vmatpush.msra.mxu0 0.0
    %258 = vmatpush.msra.mxu0 0.0
    %259 = vmatpush.msra.mxu0 0.0
    %260 = vmatpush.msra.mxu0 %v34
    %261 = vmatpush.msra.mxu0 %v33
    %262 = vmatpush.msra.mxu0 %v32
    %263 = vmatpush.msra.mxu0 %v31
    %264 = vmatmul.f32.gmra.mxu0 %v244
    %v265 = vpop.f32.mrf.mxu0
    %v266 = vadd.f32 0.0, %v265
    %267 = vmatmul.f32.gmra.mxu0 %v246
    %v268 = vpop.f32.mrf.mxu0
    %v269 = vadd.f32 0.0, %v268
    %270 = vdwg.mxu0
    %v271 = vadd.f32 %v134, %v266
    %v272 = vadd.f32 %v137, %v269
    %v273 = vxor.u32 %v271, 2147483648
    %v274 = vxor.u32 %v272, 2147483648
    %v275 = vmul.f32 %v273, 1.442695
    %v276 = vpow.pop %v275
    %v277 = vmul.f32 %v274, 1.442695
    %v278 = vpow.pop %v277
    %v279 = vadd.f32 %v276, 1.0
    %v280 = vadd.f32 %v278, 1.0
    %v281 = vrcp.pop %v279
    %v282 = vmul.f32 %v279, %v281
    %v283 = vsub.f32 1.0, %v282
    %v284 = vmul.f32 %v281, %v283
    %v285 = vadd.f32 %v281, %v284
    %vm286 = vweird.f32 %v279
    %vm287 = vweird.f32 %v281
    %vm288 = vmor %vm286, %vm287
    %v289 = vsel %vm288, %v281, %v285
    %v290 = vand.u32 2147483647, %v279
    %vm291 = vcmp.eq.f32.partialorder %v290, 8.507059e+37
    %v292 = vand.u32 %v279, 2147483648
    %v293 = vor.u32 1.1754944e-38, %v292
    %v294 = vsel %vm291, %v293, %v289
    %v295 = vmul.f32 1.0, %v294
    %v296 = vrcp.pop %v280
    %v297 = vmul.f32 %v280, %v296
    %v298 = vsub.f32 1.0, %v297
    %v299 = vmul.f32 %v296, %v298
    %v300 = vadd.f32 %v296, %v299
    %vm301 = vweird.f32 %v280
    %vm302 = vweird.f32 %v296
    %vm303 = vmor %vm301, %vm302
    %v304 = vsel %vm303, %v296, %v300
    %v305 = vand.u32 2147483647, %v280
    %vm306 = vcmp.eq.f32.partialorder %v305, 8.507059e+37
    %v307 = vand.u32 %v280, 2147483648
    %v308 = vor.u32 1.1754944e-38, %v307
    %v309 = vsel %vm306, %v308, %v304
    %v310 = vmul.f32 1.0, %v309
    %v311 = vtanh.pop %v271
    %v312 = vtanh.pop %v272
    %315 = vrot.lane.b32.xlu0 %v223, 32
    %v316 = vpop.permute.xlu0 %315
    %317 = vrot.lane.b32.xlu0 %v224, 32
    %v318 = vpop.permute.xlu0 %317
    %v321 = vmul.f32 %v295, %v316
    %v322 = vmul.f32 %v310, %v318
    %325 = vrot.lane.b32.xlu0 %v311, 64
    %v326 = vpop.permute.xlu0 %325
    %327 = vrot.lane.b32.xlu0 %v312, 64
    %v328 = vpop.permute.xlu0 %327
    %v331 = vmul.f32 %v295, %v326
    %v332 = vmul.f32 %v310, %v328
    %335 = vrot.lane.b32.xlu0 %v331, 32
    %v336 = vpop.permute.xlu0 %335
    %337 = vrot.lane.b32.xlu0 %v332, 32
    %v338 = vpop.permute.xlu0 %337
    %v341 = vadd.f32 %v321, %v336
    %v342 = vadd.f32 %v322, %v338
    %v343 = vtanh.pop %v341
    %v344 = vtanh.pop %v342
    %347 = vrot.lane.b32.xlu0 %v343, 64
    %v348 = vpop.permute.xlu0 %347
    %349 = vrot.lane.b32.xlu0 %v344, 64
    %v350 = vpop.permute.xlu0 %349
    %v353 = vmul.f32 %v295, %v348
    %v354 = vmul.f32 %v310, %v350
    %357 = vrot.lane.b32.xlu0 %v353, 32
    %v358 = vpop.permute.xlu0 %357
    %359 = vrot.lane.b32.xlu0 %v354, 32
    %v360 = vpop.permute.xlu0 %359
    %v361 = vsel %vm243, %v358, 0
    %v363 = vsel %vm243, %v360, 0
    %365 = vmatpush.msra.mxu0 0.0
    %366 = vmatpush.msra.mxu0 0.0
    %367 = vmatpush.msra.mxu0 0.0
    %368 = vmatpush.msra.mxu0 0.0
    %369 = vmatpush.msra.mxu0 0.0
    %370 = vmatpush.msra.mxu0 0.0
    %371 = vmatpush.msra.mxu0 0.0
    %372 = vmatpush.msra.mxu0 0.0
    %373 = vmatpush.msra.mxu0 0.0
    %374 = vmatpush.msra.mxu0 0.0
    %375 = vmatpush.msra.mxu0 0.0
    %376 = vmatpush.msra.mxu0 0.0
    %377 = vmatpush.msra.mxu0 %v34
    %378 = vmatpush.msra.mxu0 %v33
    %379 = vmatpush.msra.mxu0 %v32
    %380 = vmatpush.msra.mxu0 %v31
    %381 = vmatmul.f32.gmra.mxu0 %v361
    %v382 = vpop.f32.mrf.mxu0
    %v383 = vadd.f32 0.0, %v382
    %384 = vmatmul.f32.gmra.mxu0 %v363
    %v385 = vpop.f32.mrf.mxu0
    %v386 = vadd.f32 0.0, %v385
    %387 = vdwg.mxu0
    %v388 = vadd.f32 %v140, %v383
    %v389 = vadd.f32 %v143, %v386
    %v390 = vxor.u32 %v388, 2147483648
    %v391 = vxor.u32 %v389, 2147483648
    %v392 = vmul.f32 %v390, 1.442695
    %v393 = vpow.pop %v392
    %v394 = vmul.f32 %v391, 1.442695
    %v395 = vpow.pop %v394
    %v396 = vadd.f32 %v393, 1.0
    %v397 = vadd.f32 %v395, 1.0
    %v398 = vrcp.pop %v396
    %v399 = vmul.f32 %v396, %v398
    %v400 = vsub.f32 1.0, %v399
    %v401 = vmul.f32 %v398, %v400
    %v402 = vadd.f32 %v398, %v401
    %vm403 = vweird.f32 %v396
    %vm404 = vweird.f32 %v398
    %vm405 = vmor %vm403, %vm404
    %v406 = vsel %vm405, %v398, %v402
    %v407 = vand.u32 2147483647, %v396
    %vm408 = vcmp.eq.f32.partialorder %v407, 8.507059e+37
    %v409 = vand.u32 %v396, 2147483648
    %v410 = vor.u32 1.1754944e-38, %v409
    %v411 = vsel %vm408, %v410, %v406
    %v412 = vmul.f32 1.0, %v411
    %v413 = vrcp.pop %v397
    %v414 = vmul.f32 %v397, %v413
    %v415 = vsub.f32 1.0, %v414
    %v416 = vmul.f32 %v413, %v415
    %v417 = vadd.f32 %v413, %v416
    %vm418 = vweird.f32 %v397
    %vm419 = vweird.f32 %v413
    %vm420 = vmor %vm418, %vm419
    %v421 = vsel %vm420, %v413, %v417
    %v422 = vand.u32 2147483647, %v397
    %vm423 = vcmp.eq.f32.partialorder %v422, 8.507059e+37
    %v424 = vand.u32 %v397, 2147483648
    %v425 = vor.u32 1.1754944e-38, %v424
    %v426 = vsel %vm423, %v425, %v421
    %v427 = vmul.f32 1.0, %v426
    %v428 = vtanh.pop %v388
    %v429 = vtanh.pop %v389
    %v430 = vmul.f32 %v412, %v341
    %v431 = vmul.f32 %v427, %v342
    %434 = vrot.lane.b32.xlu0 %v428, 64
    %v435 = vpop.permute.xlu0 %434
    %436 = vrot.lane.b32.xlu0 %v429, 64
    %v437 = vpop.permute.xlu0 %436
    %v440 = vmul.f32 %v412, %v435
    %v441 = vmul.f32 %v427, %v437
    %444 = vrot.lane.b32.xlu0 %v440, 32
    %v445 = vpop.permute.xlu0 %444
    %446 = vrot.lane.b32.xlu0 %v441, 32
    %v447 = vpop.permute.xlu0 %446
    %v450 = vadd.f32 %v430, %v445
    %v451 = vadd.f32 %v431, %v447
    %v452 = vtanh.pop %v450
    %v453 = vtanh.pop %v451
    %456 = vrot.lane.b32.xlu0 %v452, 64
    %v457 = vpop.permute.xlu0 %456
    %458 = vrot.lane.b32.xlu0 %v453, 64
    %v459 = vpop.permute.xlu0 %458
    %v462 = vmul.f32 %v412, %v457
    %v463 = vmul.f32 %v427, %v459
    %466 = vrot.lane.b32.xlu0 %v462, 32
    %v467 = vpop.permute.xlu0 %466
    %468 = vrot.lane.b32.xlu0 %v463, 32
    %v469 = vpop.permute.xlu0 %468
    %v470 = vsel %vm243, %v467, 0
    %v472 = vsel %vm243, %v469, 0
    %474 = vmatpush.msra.mxu0 0.0
    %475 = vmatpush.msra.mxu0 0.0
    %476 = vmatpush.msra.mxu0 0.0
    %477 = vmatpush.msra.mxu0 0.0
    %478 = vmatpush.msra.mxu0 0.0
    %479 = vmatpush.msra.mxu0 0.0
    %480 = vmatpush.msra.mxu0 0.0
    %481 = vmatpush.msra.mxu0 0.0
    %482 = vmatpush.msra.mxu0 0.0
    %483 = vmatpush.msra.mxu0 0.0
    %484 = vmatpush.msra.mxu0 0.0
    %485 = vmatpush.msra.mxu0 0.0
    %486 = vmatpush.msra.mxu0 %v34
    %487 = vmatpush.msra.mxu0 %v33
    %488 = vmatpush.msra.mxu0 %v32
    %489 = vmatpush.msra.mxu0 %v31
    %490 = vmatmul.f32.gmra.mxu0 %v470
    %v491 = vpop.f32.mrf.mxu0
    %v492 = vadd.f32 0.0, %v491
    %493 = vmatmul.f32.gmra.mxu0 %v472
    %v494 = vpop.f32.mrf.mxu0
    %v495 = vadd.f32 0.0, %v494
    %496 = vdwg.mxu0
    %v497 = vadd.f32 %v146, %v492
    %v498 = vadd.f32 %v149, %v495
    %v499 = vxor.u32 %v497, 2147483648
    %v500 = vxor.u32 %v498, 2147483648
    %v501 = vmul.f32 %v499, 1.442695
    %v502 = vpow.pop %v501
    %v503 = vmul.f32 %v500, 1.442695
    %v504 = vpow.pop %v503
    %v505 = vadd.f32 %v502, 1.0
    %v506 = vadd.f32 %v504, 1.0
    %v507 = vrcp.pop %v505
    %v508 = vmul.f32 %v505, %v507
    %v509 = vsub.f32 1.0, %v508
    %v510 = vmul.f32 %v507, %v509
    %v511 = vadd.f32 %v507, %v510
    %vm512 = vweird.f32 %v505
    %vm513 = vweird.f32 %v507
    %vm514 = vmor %vm512, %vm513
    %v515 = vsel %vm514, %v507, %v511
    %v516 = vand.u32 2147483647, %v505
    %vm517 = vcmp.eq.f32.partialorder %v516, 8.507059e+37
    %v518 = vand.u32 %v505, 2147483648
    %v519 = vor.u32 1.1754944e-38, %v518
    %v520 = vsel %vm517, %v519, %v515
    %v521 = vmul.f32 1.0, %v520
    %v522 = vrcp.pop %v506
    %v523 = vmul.f32 %v506, %v522
    %v524 = vsub.f32 1.0, %v523
    %v525 = vmul.f32 %v522, %v524
    %v526 = vadd.f32 %v522, %v525
    %vm527 = vweird.f32 %v506
    %vm528 = vweird.f32 %v522
    %vm529 = vmor %vm527, %vm528
    %v530 = vsel %vm529, %v522, %v526
    %v531 = vand.u32 2147483647, %v506
    %vm532 = vcmp.eq.f32.partialorder %v531, 8.507059e+37
    %v533 = vand.u32 %v506, 2147483648
    %v534 = vor.u32 1.1754944e-38, %v533
    %v535 = vsel %vm532, %v534, %v530
    %v536 = vmul.f32 1.0, %v535
    %v537 = vtanh.pop %v497
    %v538 = vtanh.pop %v498
    %v539 = vmul.f32 %v521, %v450
    %v540 = vmul.f32 %v536, %v451
    %543 = vrot.lane.b32.xlu0 %v537, 64
    %v544 = vpop.permute.xlu0 %543
    %545 = vrot.lane.b32.xlu0 %v538, 64
    %v546 = vpop.permute.xlu0 %545
    %v549 = vmul.f32 %v521, %v544
    %v550 = vmul.f32 %v536, %v546
    %553 = vrot.lane.b32.xlu0 %v549, 32
    %v554 = vpop.permute.xlu0 %553
    %555 = vrot.lane.b32.xlu0 %v550, 32
    %v556 = vpop.permute.xlu0 %555
    %v559 = vadd.f32 %v539, %v554
    %v560 = vadd.f32 %v540, %v556
    %v561 = vtanh.pop %v559
    %v562 = vtanh.pop %v560
    %565 = vrot.lane.b32.xlu0 %v561, 64
    %v566 = vpop.permute.xlu0 %565
    %567 = vrot.lane.b32.xlu0 %v562, 64
    %v568 = vpop.permute.xlu0 %567
    %v571 = vmul.f32 %v521, %v566
    %v572 = vmul.f32 %v536, %v568
    %575 = vrot.lane.b32.xlu0 %v571, 32
    %v576 = vpop.permute.xlu0 %575
    %577 = vrot.lane.b32.xlu0 %v572, 32
    %v578 = vpop.permute.xlu0 %577
    %v579 = vsel %vm243, %v576, 0
    %v581 = vsel %vm243, %v578, 0
    %583 = vmatpush.msra.mxu0 0.0
    %584 = vmatpush.msra.mxu0 0.0
    %585 = vmatpush.msra.mxu0 0.0
    %586 = vmatpush.msra.mxu0 0.0
    %587 = vmatpush.msra.mxu0 0.0
    %588 = vmatpush.msra.mxu0 0.0
    %589 = vmatpush.msra.mxu0 0.0
    %590 = vmatpush.msra.mxu0 0.0
    %591 = vmatpush.msra.mxu0 0.0
    %592 = vmatpush.msra.mxu0 0.0
    %593 = vmatpush.msra.mxu0 0.0
    %594 = vmatpush.msra.mxu0 0.0
    %595 = vmatpush.msra.mxu0 %v34
    %596 = vmatpush.msra.mxu0 %v33
    %597 = vmatpush.msra.mxu0 %v32
    %598 = vmatpush.msra.mxu0 %v31
    %599 = vmatmul.f32.gmra.mxu0 %v579
    %v600 = vpop.f32.mrf.mxu0
    %v601 = vadd.f32 0.0, %v600
    %602 = vmatmul.f32.gmra.mxu0 %v581
    %v603 = vpop.f32.mrf.mxu0
    %v604 = vadd.f32 0.0, %v603
    %605 = vdwg.mxu0
    %v606 = vadd.f32 %v152, %v601
    %v607 = vadd.f32 %v155, %v604
    %v608 = vxor.u32 %v606, 2147483648
    %v609 = vxor.u32 %v607, 2147483648
    %v610 = vmul.f32 %v608, 1.442695
    %v611 = vpow.pop %v610
    %v612 = vmul.f32 %v609, 1.442695
    %v613 = vpow.pop %v612
    %v614 = vadd.f32 %v611, 1.0
    %v615 = vadd.f32 %v613, 1.0
    %v616 = vrcp.pop %v614
    %v617 = vmul.f32 %v614, %v616
    %v618 = vsub.f32 1.0, %v617
    %v619 = vmul.f32 %v616, %v618
    %v620 = vadd.f32 %v616, %v619
    %vm621 = vweird.f32 %v614
    %vm622 = vweird.f32 %v616
    %vm623 = vmor %vm621, %vm622
    %v624 = vsel %vm623, %v616, %v620
    %v625 = vand.u32 2147483647, %v614
    %vm626 = vcmp.eq.f32.partialorder %v625, 8.507059e+37
    %v627 = vand.u32 %v614, 2147483648
    %v628 = vor.u32 1.1754944e-38, %v627
    %v629 = vsel %vm626, %v628, %v624
    %v630 = vmul.f32 1.0, %v629
    %v631 = vrcp.pop %v615
    %v632 = vmul.f32 %v615, %v631
    %v633 = vsub.f32 1.0, %v632
    %v634 = vmul.f32 %v631, %v633
    %v635 = vadd.f32 %v631, %v634
    %vm636 = vweird.f32 %v615
    %vm637 = vweird.f32 %v631
    %vm638 = vmor %vm636, %vm637
    %v639 = vsel %vm638, %v631, %v635
    %v640 = vand.u32 2147483647, %v615
    %vm641 = vcmp.eq.f32.partialorder %v640, 8.507059e+37
    %v642 = vand.u32 %v615, 2147483648
    %v643 = vor.u32 1.1754944e-38, %v642
    %v644 = vsel %vm641, %v643, %v639
    %v645 = vmul.f32 1.0, %v644
    %v646 = vtanh.pop %v606
    %v647 = vtanh.pop %v607
    %v648 = vmul.f32 %v630, %v559
    %v649 = vmul.f32 %v645, %v560
    %652 = vrot.lane.b32.xlu0 %v646, 64
    %v653 = vpop.permute.xlu0 %652
    %654 = vrot.lane.b32.xlu0 %v647, 64
    %v655 = vpop.permute.xlu0 %654
    %v658 = vmul.f32 %v630, %v653
    %v659 = vmul.f32 %v645, %v655
    %662 = vrot.lane.b32.xlu0 %v658, 32
    %v663 = vpop.permute.xlu0 %662
    %664 = vrot.lane.b32.xlu0 %v659, 32
    %v665 = vpop.permute.xlu0 %664
    %v668 = vadd.f32 %v648, %v663
    %v669 = vadd.f32 %v649, %v665
    %v670 = vtanh.pop %v668
    %v671 = vtanh.pop %v669
    %674 = vrot.lane.b32.xlu0 %v670, 64
    %v675 = vpop.permute.xlu0 %674
    %676 = vrot.lane.b32.xlu0 %v671, 64
    %v677 = vpop.permute.xlu0 %676
    %v680 = vmul.f32 %v630, %v675
    %v681 = vmul.f32 %v645, %v677
    %684 = vrot.lane.b32.xlu0 %v680, 32
    %v685 = vpop.permute.xlu0 %684
    %686 = vrot.lane.b32.xlu0 %v681, 32
    %v687 = vpop.permute.xlu0 %686
    %v688 = vsel %vm243, %v685, 0
    %v690 = vsel %vm243, %v687, 0
    %692 = vmatpush.msra.mxu0 0.0
    %693 = vmatpush.msra.mxu0 0.0
    %694 = vmatpush.msra.mxu0 0.0
    %695 = vmatpush.msra.mxu0 0.0
    %696 = vmatpush.msra.mxu0 0.0
    %697 = vmatpush.msra.mxu0 0.0
    %698 = vmatpush.msra.mxu0 0.0
    %699 = vmatpush.msra.mxu0 0.0
    %700 = vmatpush.msra.mxu0 0.0
    %701 = vmatpush.msra.mxu0 0.0
    %702 = vmatpush.msra.mxu0 0.0
    %703 = vmatpush.msra.mxu0 0.0
    %704 = vmatpush.msra.mxu0 %v34
    %705 = vmatpush.msra.mxu0 %v33
    %706 = vmatpush.msra.mxu0 %v32
    %707 = vmatpush.msra.mxu0 %v31
    %708 = vmatmul.f32.gmra.mxu0 %v688
    %v709 = vpop.f32.mrf.mxu0
    %v710 = vadd.f32 0.0, %v709
    %711 = vmatmul.f32.gmra.mxu0 %v690
    %v712 = vpop.f32.mrf.mxu0
    %v713 = vadd.f32 0.0, %v712
    %714 = vdwg.mxu0
    %v715 = vadd.f32 %v158, %v710
    %v716 = vadd.f32 %v161, %v713
    %v717 = vxor.u32 %v715, 2147483648
    %v718 = vxor.u32 %v716, 2147483648
    %v719 = vmul.f32 %v717, 1.442695
    %v720 = vpow.pop %v719
    %v721 = vmul.f32 %v718, 1.442695
    %v722 = vpow.pop %v721
    %v723 = vadd.f32 %v720, 1.0
    %v724 = vadd.f32 %v722, 1.0
    %v725 = vrcp.pop %v723
    %v726 = vmul.f32 %v723, %v725
    %v727 = vsub.f32 1.0, %v726
    %v728 = vmul.f32 %v725, %v727
    %v729 = vadd.f32 %v725, %v728
    %vm730 = vweird.f32 %v723
    %vm731 = vweird.f32 %v725
    %vm732 = vmor %vm730, %vm731
    %v733 = vsel %vm732, %v725, %v729
    %v734 = vand.u32 2147483647, %v723
    %vm735 = vcmp.eq.f32.partialorder %v734, 8.507059e+37
    %v736 = vand.u32 %v723, 2147483648
    %v737 = vor.u32 1.1754944e-38, %v736
    %v738 = vsel %vm735, %v737, %v733
    %v739 = vmul.f32 1.0, %v738
    %v740 = vrcp.pop %v724
    %v741 = vmul.f32 %v724, %v740
    %v742 = vsub.f32 1.0, %v741
    %v743 = vmul.f32 %v740, %v742
    %v744 = vadd.f32 %v740, %v743
    %vm745 = vweird.f32 %v724
    %vm746 = vweird.f32 %v740
    %vm747 = vmor %vm745, %vm746
    %v748 = vsel %vm747, %v740, %v744
    %v749 = vand.u32 2147483647, %v724
    %vm750 = vcmp.eq.f32.partialorder %v749, 8.507059e+37
    %v751 = vand.u32 %v724, 2147483648
    %v752 = vor.u32 1.1754944e-38, %v751
    %v753 = vsel %vm750, %v752, %v748
    %v754 = vmul.f32 1.0, %v753
    %v755 = vtanh.pop %v715
    %v756 = vtanh.pop %v716
    %v757 = vmul.f32 %v739, %v668
    %v758 = vmul.f32 %v754, %v669
    %761 = vrot.lane.b32.xlu0 %v755, 64
    %v762 = vpop.permute.xlu0 %761
    %763 = vrot.lane.b32.xlu0 %v756, 64
    %v764 = vpop.permute.xlu0 %763
    %v767 = vmul.f32 %v739, %v762
    %v768 = vmul.f32 %v754, %v764
    %771 = vrot.lane.b32.xlu0 %v767, 32
    %v772 = vpop.permute.xlu0 %771
    %773 = vrot.lane.b32.xlu0 %v768, 32
    %v774 = vpop.permute.xlu0 %773
    %v777 = vadd.f32 %v757, %v772
    %v778 = vadd.f32 %v758, %v774
    %v779 = vtanh.pop %v777
    %v780 = vtanh.pop %v778
    %783 = vrot.lane.b32.xlu0 %v779, 64
    %v784 = vpop.permute.xlu0 %783
    %785 = vrot.lane.b32.xlu0 %v780, 64
    %v786 = vpop.permute.xlu0 %785
    %v789 = vmul.f32 %v739, %v784
    %v790 = vmul.f32 %v754, %v786
    %793 = vrot.lane.b32.xlu0 %v789, 32
    %v794 = vpop.permute.xlu0 %793
    %795 = vrot.lane.b32.xlu0 %v790, 32
    %v796 = vpop.permute.xlu0 %795
    %v797 = vsel %vm243, %v794, 0
    %v799 = vsel %vm243, %v796, 0
    %801 = vmatpush.msra.mxu0 0.0
    %802 = vmatpush.msra.mxu0 0.0
    %803 = vmatpush.msra.mxu0 0.0
    %804 = vmatpush.msra.mxu0 0.0
    %805 = vmatpush.msra.mxu0 0.0
    %806 = vmatpush.msra.mxu0 0.0
    %807 = vmatpush.msra.mxu0 0.0
    %808 = vmatpush.msra.mxu0 0.0
    %809 = vmatpush.msra.mxu0 0.0
    %810 = vmatpush.msra.mxu0 0.0
    %811 = vmatpush.msra.mxu0 0.0
    %812 = vmatpush.msra.mxu0 0.0
    %813 = vmatpush.msra.mxu0 %v34
    %814 = vmatpush.msra.mxu0 %v33
    %815 = vmatpush.msra.mxu0 %v32
    %816 = vmatpush.msra.mxu0 %v31
    %817 = vmatmul.f32.gmra.mxu0 %v797
    %v818 = vpop.f32.mrf.mxu0
    %v819 = vadd.f32 0.0, %v818
    %820 = vmatmul.f32.gmra.mxu0 %v799
    %v821 = vpop.f32.mrf.mxu0
    %v822 = vadd.f32 0.0, %v821
    %823 = vdwg.mxu0
    %v824 = vadd.f32 %v164, %v819
    %v825 = vadd.f32 %v167, %v822
    %v826 = vxor.u32 %v824, 2147483648
    %v827 = vxor.u32 %v825, 2147483648
    %v828 = vmul.f32 %v826, 1.442695
    %v829 = vpow.pop %v828
    %v830 = vmul.f32 %v827, 1.442695
    %v831 = vpow.pop %v830
    %v832 = vadd.f32 %v829, 1.0
    %v833 = vadd.f32 %v831, 1.0
    %v834 = vrcp.pop %v832
    %v835 = vmul.f32 %v832, %v834
    %v836 = vsub.f32 1.0, %v835
    %v837 = vmul.f32 %v834, %v836
    %v838 = vadd.f32 %v834, %v837
    %vm839 = vweird.f32 %v832
    %vm840 = vweird.f32 %v834
    %vm841 = vmor %vm839, %vm840
    %v842 = vsel %vm841, %v834, %v838
    %v843 = vand.u32 2147483647, %v832
    %vm844 = vcmp.eq.f32.partialorder %v843, 8.507059e+37
    %v845 = vand.u32 %v832, 2147483648
    %v846 = vor.u32 1.1754944e-38, %v845
    %v847 = vsel %vm844, %v846, %v842
    %v848 = vmul.f32 1.0, %v847
    %v849 = vrcp.pop %v833
    %v850 = vmul.f32 %v833, %v849
    %v851 = vsub.f32 1.0, %v850
    %v852 = vmul.f32 %v849, %v851
    %v853 = vadd.f32 %v849, %v852
    %vm854 = vweird.f32 %v833
    %vm855 = vweird.f32 %v849
    %vm856 = vmor %vm854, %vm855
    %v857 = vsel %vm856, %v849, %v853
    %v858 = vand.u32 2147483647, %v833
    %vm859 = vcmp.eq.f32.partialorder %v858, 8.507059e+37
    %v860 = vand.u32 %v833, 2147483648
    %v861 = vor.u32 1.1754944e-38, %v860
    %v862 = vsel %vm859, %v861, %v857
    %v863 = vmul.f32 1.0, %v862
    %v864 = vtanh.pop %v824
    %v865 = vtanh.pop %v825
    %v866 = vmul.f32 %v848, %v777
    %v867 = vmul.f32 %v863, %v778
    %870 = vrot.lane.b32.xlu0 %v864, 64
    %v871 = vpop.permute.xlu0 %870
    %872 = vrot.lane.b32.xlu0 %v865, 64
    %v873 = vpop.permute.xlu0 %872
    %v876 = vmul.f32 %v848, %v871
    %v877 = vmul.f32 %v863, %v873
    %880 = vrot.lane.b32.xlu0 %v876, 32
    %v881 = vpop.permute.xlu0 %880
    %882 = vrot.lane.b32.xlu0 %v877, 32
    %v883 = vpop.permute.xlu0 %882
    %v886 = vadd.f32 %v866, %v881
    %v887 = vadd.f32 %v867, %v883
    %v888 = vtanh.pop %v886
    %v889 = vtanh.pop %v887
    %892 = vrot.lane.b32.xlu0 %v888, 64
    %v893 = vpop.permute.xlu0 %892
    %894 = vrot.lane.b32.xlu0 %v889, 64
    %v895 = vpop.permute.xlu0 %894
    %v898 = vmul.f32 %v848, %v893
    %v899 = vmul.f32 %v863, %v895
    %902 = vrot.lane.b32.xlu0 %v898, 32
    %v903 = vpop.permute.xlu0 %902
    %904 = vrot.lane.b32.xlu0 %v899, 32
    %v905 = vpop.permute.xlu0 %904
    %v906 = vsel %vm243, %v903, 0
    %v908 = vsel %vm243, %v905, 0
    %910 = vmatpush.msra.mxu0 0.0
    %911 = vmatpush.msra.mxu0 0.0
    %912 = vmatpush.msra.mxu0 0.0
    %913 = vmatpush.msra.mxu0 0.0
    %914 = vmatpush.msra.mxu0 0.0
    %915 = vmatpush.msra.mxu0 0.0
    %916 = vmatpush.msra.mxu0 0.0
    %917 = vmatpush.msra.mxu0 0.0
    %918 = vmatpush.msra.mxu0 0.0
    %919 = vmatpush.msra.mxu0 0.0
    %920 = vmatpush.msra.mxu0 0.0
    %921 = vmatpush.msra.mxu0 0.0
    %922 = vmatpush.msra.mxu0 %v34
    %923 = vmatpush.msra.mxu0 %v33
    %924 = vmatpush.msra.mxu0 %v32
    %925 = vmatpush.msra.mxu0 %v31
    %926 = vmatmul.f32.gmra.mxu0 %v906
    %v927 = vpop.f32.mrf.mxu0
    %v928 = vadd.f32 0.0, %v927
    %929 = vmatmul.f32.gmra.mxu0 %v908
    %v930 = vpop.f32.mrf.mxu0
    %v931 = vadd.f32 0.0, %v930
    %932 = vdwg.mxu0
    %v933 = vadd.f32 %v170, %v928
    %v934 = vadd.f32 %v173, %v931
    %v935 = vxor.u32 %v933, 2147483648
    %v936 = vxor.u32 %v934, 2147483648
    %v937 = vmul.f32 %v935, 1.442695
    %v938 = vpow.pop %v937
    %v939 = vmul.f32 %v936, 1.442695
    %v940 = vpow.pop %v939
    %v941 = vadd.f32 %v938, 1.0
    %v942 = vadd.f32 %v940, 1.0
    %v943 = vrcp.pop %v941
    %v944 = vmul.f32 %v941, %v943
    %v945 = vsub.f32 1.0, %v944
    %v946 = vmul.f32 %v943, %v945
    %v947 = vadd.f32 %v943, %v946
    %vm948 = vweird.f32 %v941
    %vm949 = vweird.f32 %v943
    %vm950 = vmor %vm948, %vm949
    %v951 = vsel %vm950, %v943, %v947
    %v952 = vand.u32 2147483647, %v941
    %vm953 = vcmp.eq.f32.partialorder %v952, 8.507059e+37
    %v954 = vand.u32 %v941, 2147483648
    %v955 = vor.u32 1.1754944e-38, %v954
    %v956 = vsel %vm953, %v955, %v951
    %v957 = vmul.f32 1.0, %v956
    %v958 = vrcp.pop %v942
    %v959 = vmul.f32 %v942, %v958
    %v960 = vsub.f32 1.0, %v959
    %v961 = vmul.f32 %v958, %v960
    %v962 = vadd.f32 %v958, %v961
    %vm963 = vweird.f32 %v942
    %vm964 = vweird.f32 %v958
    %vm965 = vmor %vm963, %vm964
    %v966 = vsel %vm965, %v958, %v962
    %v967 = vand.u32 2147483647, %v942
    %vm968 = vcmp.eq.f32.partialorder %v967, 8.507059e+37
    %v969 = vand.u32 %v942, 2147483648
    %v970 = vor.u32 1.1754944e-38, %v969
    %v971 = vsel %vm968, %v970, %v966
    %v972 = vmul.f32 1.0, %v971
    %v973 = vtanh.pop %v933
    %v974 = vtanh.pop %v934
    %v975 = vmul.f32 %v957, %v886
    %v976 = vmul.f32 %v972, %v887
    %979 = vrot.lane.b32.xlu0 %v973, 64
    %v980 = vpop.permute.xlu0 %979
    %981 = vrot.lane.b32.xlu0 %v974, 64
    %v982 = vpop.permute.xlu0 %981
    %v985 = vmul.f32 %v957, %v980
    %v986 = vmul.f32 %v972, %v982
    %989 = vrot.lane.b32.xlu0 %v985, 32
    %v990 = vpop.permute.xlu0 %989
    %991 = vrot.lane.b32.xlu0 %v986, 32
    %v992 = vpop.permute.xlu0 %991
    %v995 = vadd.f32 %v975, %v990
    %v996 = vadd.f32 %v976, %v992
    %v997 = vtanh.pop %v995
    %v998 = vtanh.pop %v996
    %1001 = vrot.lane.b32.xlu0 %v997, 64
    %v1002 = vpop.permute.xlu0 %1001
    %1003 = vrot.lane.b32.xlu0 %v998, 64
    %v1004 = vpop.permute.xlu0 %1003
    %v1007 = vmul.f32 %v957, %v1002
    %v1008 = vmul.f32 %v972, %v1004
    %v1009 = vld [vmem:[%s4] sm:$0xff]
    %v1010 = vld [vmem:[%s4 + $0x8] sm:$0xff]
    %v1011 = vld [vmem:[%s4 + $0x10] sm:$0xff]
    %v1012 = vld [vmem:[%s4 + $0x18] sm:$0xff]
    %v1013 = vld [vmem:[%s4 + $0x20] sm:$0xff]
    %v1014 = vld [vmem:[%s4 + $0x28] sm:$0xff]
    %v1015 = vld [vmem:[%s4 + $0x30] sm:$0xff]
    %v1016 = vld [vmem:[%s4 + $0x38] sm:$0xff]
    %v1017 = vld [vmem:[%s5] sm:$0x3]
    %v1019 = vperm.slane %v1017, 0
    %v1020 = vperm.slane %v1017, 1
    %1025 = vrot.lane.b32.xlu0 %v1007, 32
    %v1026 = vpop.permute.xlu0 %1025
    %1027 = vrot.lane.b32.xlu0 %v1008, 32
    %v1028 = vpop.permute.xlu0 %1027
    %v1029 = vsel %vm243, %v1026, 0
    %v1031 = vsel %vm243, %v1028, 0
    %1033 = vmatpush.msra.mxu0 0.0
    %1034 = vmatpush.msra.mxu0 0.0
    %1035 = vmatpush.msra.mxu0 0.0
    %1036 = vmatpush.msra.mxu0 0.0
    %1037 = vmatpush.msra.mxu0 0.0
    %1038 = vmatpush.msra.mxu0 0.0
    %1039 = vmatpush.msra.mxu0 0.0
    %1040 = vmatpush.msra.mxu0 0.0
    %1041 = vmatpush.msra.mxu0 0.0
    %1042 = vmatpush.msra.mxu0 0.0
    %1043 = vmatpush.msra.mxu0 0.0
    %1044 = vmatpush.msra.mxu0 0.0
    %1045 = vmatpush.msra.mxu0 %v1015
    %1046 = vmatpush.msra.mxu0 %v1013
    %1047 = vmatpush.msra.mxu0 %v1011
    %1048 = vmatpush.msra.mxu0 %v1009
    %1049 = vmatmul.f32.gmra.mxu0 %v244
    %v1050 = vpop.f32.mrf.mxu0
    %v1051 = vadd.f32 %v1019, %v1050
    %1052 = vmatmul.f32.gmra.mxu0 %v246
    %v1053 = vpop.f32.mrf.mxu0
    %v1054 = vadd.f32 %v1019, %v1053
    %1055 = vmatmul.f32.gmra.mxu0 %v361
    %v1056 = vpop.f32.mrf.mxu0
    %v1057 = vadd.f32 %v1019, %v1056
    %1058 = vmatmul.f32.gmra.mxu0 %v363
    %v1059 = vpop.f32.mrf.mxu0
    %v1060 = vadd.f32 %v1019, %v1059
    %1061 = vmatmul.f32.gmra.mxu0 %v470
    %v1062 = vpop.f32.mrf.mxu0
    %v1063 = vadd.f32 %v1019, %v1062
    %1064 = vmatmul.f32.gmra.mxu0 %v472
    %v1065 = vpop.f32.mrf.mxu0
    %v1066 = vadd.f32 %v1019, %v1065
    %1067 = vmatmul.f32.gmra.mxu0 %v579
    %v1068 = vpop.f32.mrf.mxu0
    %v1069 = vadd.f32 %v1019, %v1068
    %1070 = vmatmul.f32.gmra.mxu0 %v581
    %v1071 = vpop.f32.mrf.mxu0
    %v1072 = vadd.f32 %v1019, %v1071
    %1073 = vmatmul.f32.gmra.mxu0 %v688
    %v1074 = vpop.f32.mrf.mxu0
    %v1075 = vadd.f32 %v1019, %v1074
    %1076 = vmatmul.f32.gmra.mxu0 %v690
    %v1077 = vpop.f32.mrf.mxu0
    %v1078 = vadd.f32 %v1019, %v1077
    %1079 = vmatmul.f32.gmra.mxu0 %v797
    %v1080 = vpop.f32.mrf.mxu0
    %v1081 = vadd.f32 %v1019, %v1080
    %1082 = vmatmul.f32.gmra.mxu0 %v799
    %v1083 = vpop.f32.mrf.mxu0
    %v1084 = vadd.f32 %v1019, %v1083
    %1085 = vmatmul.f32.gmra.mxu0 %v906
    %v1086 = vpop.f32.mrf.mxu0
    %v1087 = vadd.f32 %v1019, %v1086
    %1088 = vmatmul.f32.gmra.mxu0 %v908
    %v1089 = vpop.f32.mrf.mxu0
    %v1090 = vadd.f32 %v1019, %v1089
    %1091 = vmatmul.f32.gmra.mxu0 %v1029
    %v1092 = vpop.f32.mrf.mxu0
    %v1093 = vadd.f32 %v1019, %v1092
    %1094 = vmatmul.f32.gmra.mxu0 %v1031
    %v1095 = vpop.f32.mrf.mxu0
    %v1096 = vadd.f32 %v1019, %v1095
    %1097 = vdwg.mxu0
    %1098 = vmatpush.msra.mxu0 0.0
    %1099 = vmatpush.msra.mxu0 0.0
    %1100 = vmatpush.msra.mxu0 0.0
    %1101 = vmatpush.msra.mxu0 0.0
    %1102 = vmatpush.msra.mxu0 0.0
    %1103 = vmatpush.msra.mxu0 0.0
    %1104 = vmatpush.msra.mxu0 0.0
    %1105 = vmatpush.msra.mxu0 0.0
    %1106 = vmatpush.msra.mxu0 0.0
    %1107 = vmatpush.msra.mxu0 0.0
    %1108 = vmatpush.msra.mxu0 0.0
    %1109 = vmatpush.msra.mxu0 0.0
    %1110 = vmatpush.msra.mxu0 %v1016
    %1111 = vmatpush.msra.mxu0 %v1014
    %1112 = vmatpush.msra.mxu0 %v1012
    %1113 = vmatpush.msra.mxu0 %v1010
    %1114 = vmatmul.f32.gmra.mxu0 %v244
    %v1115 = vpop.f32.mrf.mxu0
    %v1116 = vadd.f32 %v1020, %v1115
    %1117 = vmatmul.f32.gmra.mxu0 %v246
    %v1118 = vpop.f32.mrf.mxu0
    %v1119 = vadd.f32 %v1020, %v1118
    %1120 = vmatmul.f32.gmra.mxu0 %v361
    %v1121 = vpop.f32.mrf.mxu0
    %v1122 = vadd.f32 %v1020, %v1121
    %1123 = vmatmul.f32.gmra.mxu0 %v363
    %v1124 = vpop.f32.mrf.mxu0
    %v1125 = vadd.f32 %v1020, %v1124
    %1126 = vmatmul.f32.gmra.mxu0 %v470
    %v1127 = vpop.f32.mrf.mxu0
    %v1128 = vadd.f32 %v1020, %v1127
    %1129 = vmatmul.f32.gmra.mxu0 %v472
    %v1130 = vpop.f32.mrf.mxu0
    %v1131 = vadd.f32 %v1020, %v1130
    %1132 = vmatmul.f32.gmra.mxu0 %v579
    %v1133 = vpop.f32.mrf.mxu0
    %v1134 = vadd.f32 %v1020, %v1133
    %1135 = vmatmul.f32.gmra.mxu0 %v581
    %v1136 = vpop.f32.mrf.mxu0
    %v1137 = vadd.f32 %v1020, %v1136
    %1138 = vmatmul.f32.gmra.mxu0 %v688
    %v1139 = vpop.f32.mrf.mxu0
    %v1140 = vadd.f32 %v1020, %v1139
    %1141 = vmatmul.f32.gmra.mxu0 %v690
    %v1142 = vpop.f32.mrf.mxu0
    %v1143 = vadd.f32 %v1020, %v1142
    %1144 = vmatmul.f32.gmra.mxu0 %v797
    %v1145 = vpop.f32.mrf.mxu0
    %v1146 = vadd.f32 %v1020, %v1145
    %1147 = vmatmul.f32.gmra.mxu0 %v799
    %v1148 = vpop.f32.mrf.mxu0
    %v1149 = vadd.f32 %v1020, %v1148
    %1150 = vmatmul.f32.gmra.mxu0 %v906
    %v1151 = vpop.f32.mrf.mxu0
    %v1152 = vadd.f32 %v1020, %v1151
    %1153 = vmatmul.f32.gmra.mxu0 %v908
    %v1154 = vpop.f32.mrf.mxu0
    %v1155 = vadd.f32 %v1020, %v1154
    %1156 = vmatmul.f32.gmra.mxu0 %v1029
    %v1157 = vpop.f32.mrf.mxu0
    %v1158 = vadd.f32 %v1020, %v1157
    %1159 = vmatmul.f32.gmra.mxu0 %v1031
    %v1160 = vpop.f32.mrf.mxu0
    %v1161 = vadd.f32 %v1020, %v1160
    %1162 = vdwg.mxu0
    %v1163 = vmax.f32 %v1051, 0.0
    %v1164 = vmax.f32 %v1116, 0.0
    %v1165 = vmax.f32 %v1054, 0.0
    %v1166 = vmax.f32 %v1119, 0.0
    %v1167 = vmax.f32 %v1057, 0.0
    %v1168 = vmax.f32 %v1122, 0.0
    %v1169 = vmax.f32 %v1060, 0.0
    %v1170 = vmax.f32 %v1125, 0.0
    %v1171 = vmax.f32 %v1063, 0.0
    %v1172 = vmax.f32 %v1128, 0.0
    %v1173 = vmax.f32 %v1066, 0.0
    %v1174 = vmax.f32 %v1131, 0.0
    %v1175 = vmax.f32 %v1069, 0.0
    %v1176 = vmax.f32 %v1134, 0.0
    %v1177 = vmax.f32 %v1072, 0.0
    %v1178 = vmax.f32 %v1137, 0.0
    %v1179 = vmax.f32 %v1075, 0.0
    %v1180 = vmax.f32 %v1140, 0.0
    %v1181 = vmax.f32 %v1078, 0.0
    %v1182 = vmax.f32 %v1143, 0.0
    %v1183 = vmax.f32 %v1081, 0.0
    %v1184 = vmax.f32 %v1146, 0.0
    %v1185 = vmax.f32 %v1084, 0.0
    %v1186 = vmax.f32 %v1149, 0.0
    %v1187 = vmax.f32 %v1087, 0.0
    %v1188 = vmax.f32 %v1152, 0.0
    %v1189 = vmax.f32 %v1090, 0.0
    %v1190 = vmax.f32 %v1155, 0.0
    %v1191 = vmax.f32 %v1093, 0.0
    %v1192 = vmax.f32 %v1158, 0.0
    %v1193 = vmax.f32 %v1096, 0.0
    %v1194 = vmax.f32 %v1161, 0.0
    %v1195 = vld [vmem:[%s6] sm:$0x3]
    %v1197 = vperm.slane %v1195, 0
    %v1198 = vperm.slane %v1195, 1
    %v1201 = vmul.f32 %v1163, %v1197
    %v1202 = vmul.f32 %v1164, %v1198
    %v1203 = vmul.f32 %v1165, %v1197
    %v1204 = vmul.f32 %v1166, %v1198
    %v1205 = vmul.f32 %v1167, %v1197
    %v1206 = vmul.f32 %v1168, %v1198
    %v1207 = vmul.f32 %v1169, %v1197
    %v1208 = vmul.f32 %v1170, %v1198
    %v1209 = vmul.f32 %v1171, %v1197
    %v1210 = vmul.f32 %v1172, %v1198
    %v1211 = vmul.f32 %v1173, %v1197
    %v1212 = vmul.f32 %v1174, %v1198
    %v1213 = vmul.f32 %v1175, %v1197
    %v1214 = vmul.f32 %v1176, %v1198
    %v1215 = vmul.f32 %v1177, %v1197
    %v1216 = vmul.f32 %v1178, %v1198
    %v1217 = vmul.f32 %v1179, %v1197
    %v1218 = vmul.f32 %v1180, %v1198
    %v1219 = vmul.f32 %v1181, %v1197
    %v1220 = vmul.f32 %v1182, %v1198
    %v1221 = vmul.f32 %v1183, %v1197
    %v1222 = vmul.f32 %v1184, %v1198
    %v1223 = vmul.f32 %v1185, %v1197
    %v1224 = vmul.f32 %v1186, %v1198
    %v1225 = vmul.f32 %v1187, %v1197
    %v1226 = vmul.f32 %v1188, %v1198
    %v1227 = vmul.f32 %v1189, %v1197
    %v1228 = vmul.f32 %v1190, %v1198
    %v1229 = vmul.f32 %v1191, %v1197
    %v1230 = vmul.f32 %v1192, %v1198
    %v1231 = vmul.f32 %v1193, %v1197
    %v1232 = vmul.f32 %v1194, %v1198
    %v1233 = vadd.f32 %v1201, %v1202
    %1234 = vadd.xlane.f32.xlu0 %v1233
    %v1235 = vpop.xlane.xlu0 %1234
    %v1236 = vadd.f32 %v1203, %v1204
    %1237 = vadd.xlane.f32.xlu0 %v1236
    %v1238 = vpop.xlane.xlu0 %1237
    %v1239 = vadd.f32 %v1205, %v1206
    %1240 = vadd.xlane.f32.xlu0 %v1239
    %v1241 = vpop.xlane.xlu0 %1240
    %v1242 = vadd.f32 %v1207, %v1208
    %1243 = vadd.xlane.f32.xlu0 %v1242
    %v1244 = vpop.xlane.xlu0 %1243
    %v1245 = vadd.f32 %v1209, %v1210
    %1246 = vadd.xlane.f32.xlu0 %v1245
    %v1247 = vpop.xlane.xlu0 %1246
    %v1248 = vadd.f32 %v1211, %v1212
    %1249 = vadd.xlane.f32.xlu0 %v1248
    %v1250 = vpop.xlane.xlu0 %1249
    %v1251 = vadd.f32 %v1213, %v1214
    %1252 = vadd.xlane.f32.xlu0 %v1251
    %v1253 = vpop.xlane.xlu0 %1252
    %v1254 = vadd.f32 %v1215, %v1216
    %1255 = vadd.xlane.f32.xlu0 %v1254
    %v1256 = vpop.xlane.xlu0 %1255
    %v1257 = vadd.f32 %v1217, %v1218
    %1258 = vadd.xlane.f32.xlu0 %v1257
    %v1259 = vpop.xlane.xlu0 %1258
    %v1260 = vadd.f32 %v1219, %v1220
    %1261 = vadd.xlane.f32.xlu0 %v1260
    %v1262 = vpop.xlane.xlu0 %1261
    %v1263 = vadd.f32 %v1221, %v1222
    %1264 = vadd.xlane.f32.xlu0 %v1263
    %v1265 = vpop.xlane.xlu0 %1264
    %v1266 = vadd.f32 %v1223, %v1224
    %1267 = vadd.xlane.f32.xlu0 %v1266
    %v1268 = vpop.xlane.xlu0 %1267
    %v1269 = vadd.f32 %v1225, %v1226
    %1270 = vadd.xlane.f32.xlu0 %v1269
    %v1271 = vpop.xlane.xlu0 %1270
    %v1272 = vadd.f32 %v1227, %v1228
    %1273 = vadd.xlane.f32.xlu0 %v1272
    %v1274 = vpop.xlane.xlu0 %1273
    %v1275 = vadd.f32 %v1229, %v1230
    %1276 = vadd.xlane.f32.xlu0 %v1275
    %v1277 = vpop.xlane.xlu0 %1276
    %v1278 = vadd.f32 %v1231, %v1232
    %1279 = vadd.xlane.f32.xlu0 %v1278
    %v1280 = vpop.xlane.xlu0 %1279
    %s1281 = sld [smem:[#allocation2]]
    %v1282 = vstv %s1281
    %v1283 = vadd.f32 %v1235, %v1282
    %v1284 = vadd.f32 %v1238, %v1282
    %v1285 = vadd.f32 %v1241, %v1282
    %v1286 = vadd.f32 %v1244, %v1282
    %v1287 = vadd.f32 %v1247, %v1282
    %v1288 = vadd.f32 %v1250, %v1282
    %v1289 = vadd.f32 %v1253, %v1282
    %v1290 = vadd.f32 %v1256, %v1282
    %v1291 = vadd.f32 %v1259, %v1282
    %v1292 = vadd.f32 %v1262, %v1282
    %v1293 = vadd.f32 %v1265, %v1282
    %v1294 = vadd.f32 %v1268, %v1282
    %v1295 = vadd.f32 %v1271, %v1282
    %v1296 = vadd.f32 %v1274, %v1282
    %v1297 = vadd.f32 %v1277, %v1282
    %v1298 = vadd.f32 %v1280, %v1282
    %1299 = vst [vmem:[#allocation3] sm:$0xff] %v1283
    %1300 = vst [vmem:[#allocation3 + $0x8] sm:$0xff] %v1284
    %1301 = vst [vmem:[#allocation3 + $0x10] sm:$0xff] %v1285
    %1302 = vst [vmem:[#allocation3 + $0x18] sm:$0xff] %v1286
    %1303 = vst [vmem:[#allocation3 + $0x20] sm:$0xff] %v1287
    %1304 = vst [vmem:[#allocation3 + $0x28] sm:$0xff] %v1288
    %1305 = vst [vmem:[#allocation3 + $0x30] sm:$0xff] %v1289
    %1306 = vst [vmem:[#allocation3 + $0x38] sm:$0xff] %v1290
    %1307 = vst [vmem:[#allocation3 + $0x40] sm:$0xff] %v1291
    %1308 = vst [vmem:[#allocation3 + $0x48] sm:$0xff] %v1292
    %1309 = vst [vmem:[#allocation3 + $0x50] sm:$0xff] %v1293
    %1310 = vst [vmem:[#allocation3 + $0x58] sm:$0xff] %v1294
    %1311 = vst [vmem:[#allocation3 + $0x60] sm:$0xff] %v1295
    %1312 = vst [vmem:[#allocation3 + $0x68] sm:$0xff] %v1296
    %1313 = vst [vmem:[#allocation3 + $0x70] sm:$0xff] %v1297
    %1314 = vst [vmem:[#allocation3 + $0x78] sm:$0xff] %v1298
    // Predicated region
    $region34: #{tpu_custom_call.1} parent=1 // pred_check
      _
    $region35: #{tpu_custom_call.1} parent=1 // pred_check_branch
      %1316 = sbr.rel (0) target = $region37
    $region36: #{tpu_custom_call.1} parent=1 // pred_region
      %1318 = vsyncadd [#allocation4], 0
      %s1319 = sshll.u32 [#allocation3], 4
      %s1320 = int_to_ptr.vmem [resolvable:$true] %s1319
      %s1321 = sshll.u32 %s8, 4
      %s1322 = int_to_ptr.hbm [resolvable:$true] %s1321
      %1327 = dma.vmem_to_hbm [thread:$0]  %s1320, 2048, %s1322, [#allocation4], 128, 128, 8
    $region37: #{tpu_custom_call.1} parent=1 // pred_fallthru
      _
    // Predicated region
    $region38: #{tpu_custom_call.1} parent=1 // pred_check
      _
    $region39: #{tpu_custom_call.1} parent=1 // pred_check_branch
      %1329 = sbr.rel (0) target = $region41
    $region40: #{tpu_custom_call.1} parent=1 // pred_region
      %1331 = dma.done [#allocation4], 2048
    $region41: #{tpu_custom_call.1} parent=1 // pred_fallthru
      _
    %1332 = vsyncpa [#allocation4], 1

</llo_original>
